<compile_context>
chip_gen: v5e
topology: v5e:2x2
jax: 0.10.0
libtpu: 0.0.40
codegen_flags: <defaults>
</compile_context>

<pallas_src>
import jax
import jax.numpy as jnp
import numpy as np
from jax import lax
from jax.experimental import pallas as pl
from jax.experimental.pallas import tpu as pltpu


def _round_up(x, m):
    return (x + m - 1) // m * m


# ---------------------------------------------------------------------------
# The recurrence kernel: one grid step == one chunk of C timesteps.
#   prologue : xw[t] = x[t] @ w_xh + b_h            (one batched MXU matmul)
#   loop     : h     = tanh(xw[t] + h @ w_hh)       (serial, K = Hid only)
#   epilogue : o[t]  = h[t] @ w_out + b_out         (one batched MXU matmul)
# Weights live single-buffered in VMEM scratch (DMA'd once at chunk 0);
# the hidden state is carried across chunks in VMEM scratch.
# ---------------------------------------------------------------------------
def rnn_chunk_kernel(x_ref, h0_ref, bh_ref, bo_ref,          # blocked VMEM inputs
                     w_xh_hbm, w_hh_hbm, w_out_hbm,          # pl.ANY (HBM) inputs
                     hseq_ref, oseq_ref,                     # outputs
                     w_xh_v, w_hh_v, w_out_v,                # resident weights (scratch)
                     xw_v, h_v, sem):                        # chunk xw, h carry, DMA sems
    c = pl.program_id(0)
    C, B, Hid = xw_v.shape                 # static chunk / padded batch / padded hidden
    In_pad = x_ref.shape[-1]

    # One-time setup: single-buffered resident copies of the weights (ANY
    # memory space => the auto-pipeliner does not double-buffer them), plus
    # the initial hidden state into the carry scratch.
    @pl.when(c == 0)
    def _():
        cp_xh = pltpu.make_async_copy(w_xh_hbm, w_xh_v, sem.at[0])
        cp_hh = pltpu.make_async_copy(w_hh_hbm, w_hh_v, sem.at[1])
        cp_o = pltpu.make_async_copy(w_out_hbm, w_out_v, sem.at[2])
        cp_xh.start()
        cp_hh.start()
        cp_o.start()
        cp_xh.wait()
        cp_hh.wait()
        cp_o.wait()
        h_v[...] = h0_ref[...]

    # ---- chunk prologue: hoisted input projection for all C steps ----------
    x_flat = x_ref[...].reshape(C * B, In_pad).astype(w_xh_v.dtype)
    xw = jnp.dot(x_flat, w_xh_v[...], preferred_element_type=jnp.float32)
    xw_v[...] = (xw + bh_ref[...]).reshape(C, B, Hid)

    # ---- serial recurrence within the chunk (per-step dot has K = Hid) -----
    def step(i, carry):
        pre = xw_v[i] + jnp.dot(h_v[...].astype(w_hh_v.dtype), w_hh_v[...],
                                preferred_element_type=jnp.float32)
        h_new = jnp.tanh(pre)
        h_v[...] = h_new                   # carry for next step / next chunk
        hseq_ref[i] = h_new                # emit this step's hidden state
        return carry

    lax.fori_loop(0, C, step, 0, unroll=True)

    # ---- chunk epilogue: fused output projection while hseq is in VMEM -----
    hs = hseq_ref[...].reshape(C * B, Hid).astype(w_out_v.dtype)
    o = jnp.dot(hs, w_out_v[...], preferred_element_type=jnp.float32) + bo_ref[...]
    oseq_ref[...] = o.reshape(C, B, oseq_ref.shape[-1])


# ---------------------------------------------------------------------------
# One-time parameter prep (NOT in the per-call hot path): pad to 128 lanes,
# pre-transpose the nn.Linear weight, cast weights to bf16 MXU operands.
# ---------------------------------------------------------------------------
def prepare_params(w_xh, w_hh, b_h, w_lin, b_lin, compute_dtype=jnp.bfloat16):
    In, Hid = w_xh.shape
    In_pad, Hid_pad = _round_up(In, 128), _round_up(Hid, 128)

    def pad2(a, rows, cols):
        return jnp.pad(a.astype(jnp.float32),
                       ((0, rows - a.shape[0]), (0, cols - a.shape[1])))

    return {
        "w_xh": pad2(w_xh, In_pad, Hid_pad).astype(compute_dtype),
        "w_hh": pad2(w_hh, Hid_pad, Hid_pad).astype(compute_dtype),
        # nn.Linear weight pre-transposed: (Hid_pad, In_pad)
        "w_out": pad2(w_lin.T, Hid_pad, In_pad).astype(compute_dtype),
        "b_h": jnp.pad(b_h.astype(jnp.float32),
                       (0, Hid_pad - Hid)).reshape(1, Hid_pad),
        "b_out": jnp.pad(b_lin.astype(jnp.float32),
                         (0, In_pad - In)).reshape(1, In_pad),
        "dims": (In, Hid, In_pad, Hid_pad),
    }


# ---------------------------------------------------------------------------
# Full-sequence forward:   x_seq: (T, B, In), h0: (B, Hid)
# returns (o_seq (T,B,In), (h_T,), h_seq (T,B,Hid))
# ---------------------------------------------------------------------------
def rnn_forward_sequence(x_seq, h0, params, chunk=8):
    In, Hid, In_pad, Hid_pad = params["dims"]
    T, B, _ = x_seq.shape
    B_pad = _round_up(B, 8)
    C = min(chunk, T)                      # timesteps per grid step
    Tp = _round_up(T, C)                   # pad T to a whole number of chunks

    x_p = jnp.pad(x_seq.astype(jnp.float32),
                  ((0, Tp - T), (0, B_pad - B), (0, In_pad - In)))
    h0_p = jnp.pad(h0.astype(jnp.float32),
                   ((0, B_pad - B), (0, Hid_pad - Hid)))

    wdt = params["w_hh"].dtype

    hseq_p, oseq_p = pl.pallas_call(
        rnn_chunk_kernel,
        out_shape=(
            jax.ShapeDtypeStruct((Tp, B_pad, Hid_pad), jnp.float32),
            jax.ShapeDtypeStruct((Tp, B_pad, In_pad), jnp.float32),
        ),
        grid_spec=pltpu.PrefetchScalarGridSpec(
            num_scalar_prefetch=0,
            grid=(Tp // C,),
            in_specs=[
                pl.BlockSpec((C, B_pad, In_pad), lambda c: (c, 0, 0)),   # x chunk
                pl.BlockSpec((B_pad, Hid_pad), lambda c: (0, 0)),        # h0
                pl.BlockSpec((1, Hid_pad), lambda c: (0, 0)),            # b_h
                pl.BlockSpec((1, In_pad), lambda c: (0, 0)),             # b_out
                pl.BlockSpec(memory_space=pl.ANY),                       # w_xh (HBM)
                pl.BlockSpec(memory_space=pl.ANY),                       # w_hh (HBM)
                pl.BlockSpec(memory_space=pl.ANY),                       # w_out (HBM)
            ],
            out_specs=[
                pl.BlockSpec((C, B_pad, Hid_pad), lambda c: (c, 0, 0)),  # h_seq
                pl.BlockSpec((C, B_pad, In_pad), lambda c: (c, 0, 0)),   # o_seq
            ],
            scratch_shapes=[
                pltpu.VMEM((In_pad, Hid_pad), wdt),            # resident w_xh
                pltpu.VMEM((Hid_pad, Hid_pad), wdt),           # resident w_hh
                pltpu.VMEM((Hid_pad, In_pad), wdt),            # resident w_out
                pltpu.VMEM((C, B_pad, Hid_pad), jnp.float32),  # xw chunk
                pltpu.VMEM((B_pad, Hid_pad), jnp.float32),     # h carry
                pltpu.SemaphoreType.DMA((3,)),                 # weight-load sems
            ],
        ),
        compiler_params=pltpu.CompilerParams(
            # The hidden-state carry lives in VMEM scratch, so the time-chunk
            # axis MUST execute strictly in order: keep it "arbitrary" —
            # never mark it parallel / split it across cores.
            dimension_semantics=("arbitrary",),
            vmem_limit_bytes=48 * 1024 * 1024,   # leaves headroom on v7x's 64 MiB
        ),
    )(x_p, h0_p, params["b_h"], params["b_out"],
      params["w_xh"], params["w_hh"], params["w_out"])

    h_seq = hseq_p[:T, :B, :Hid]
    o_seq = oseq_p[:T, :B, :In]
    return o_seq, (h_seq[-1],), h_seq


def rnn_forward_step(x, state, params):
    """Single-step API matching Rnn.forward(x, (h,)) -> (o, (h_new,))."""
    h, = state
    o_seq, new_state, _ = rnn_forward_sequence(x[None], h, params, chunk=1)
    return o_seq[0], new_state


# ---------------------------------------------------------------------------
# Deterministic init mirroring Rnn.reset_parameters (non-gated, non-leaky).
# ---------------------------------------------------------------------------
def init_params(key, input_size, hidden_size):
    k1, k2, k3, k4 = jax.random.split(key, 4)
    # xavier_uniform for w_xh
    limit_xh = np.sqrt(6.0 / (input_size + hidden_size))
    w_xh = jax.random.uniform(k1, (input_size, hidden_size), jnp.float32,
                              -limit_xh, limit_xh)
    # orthogonal init for w_hh (orthogonal_hidden_init=True)
    a = jax.random.normal(k2, (hidden_size, hidden_size), jnp.float32)
    q, r = jnp.linalg.qr(a)
    w_hh = q * jnp.sign(jnp.diag(r))[None, :]
    # b_h zero
    b_h = jnp.zeros((hidden_size,), jnp.float32)
    # nn.Linear(hidden, input) default reset: U(-1/sqrt(fan_in), 1/sqrt(fan_in))
    bound = 1.0 / np.sqrt(hidden_size)
    w_lin = jax.random.uniform(k3, (input_size, hidden_size), jnp.float32,
                               -bound, bound)
    b_lin = jax.random.uniform(k4, (input_size,), jnp.float32, -bound, bound)
    return w_xh, w_hh, b_h, w_lin, b_lin


# ---------------------------------------------------------------------------
# Pure-numpy (float64) per-step reference of the PyTorch forward.
# ---------------------------------------------------------------------------
def rnn_reference_sequence(x_seq, h0, w_xh, w_hh, b_h, w_lin, b_lin):
    x_seq = np.asarray(x_seq, np.float64)
    h = np.asarray(h0, np.float64)
    w_xh = np.asarray(w_xh, np.float64)
    w_hh = np.asarray(w_hh, np.float64)
    b_h = np.asarray(b_h, np.float64)
    w_lin = np.asarray(w_lin, np.float64)
    b_lin = np.asarray(b_lin, np.float64)
    os, hs = [], []
    for t in range(x_seq.shape[0]):
        pre = h @ w_hh + b_h + x_seq[t] @ w_xh
        h = np.tanh(pre)
        o = h @ w_lin.T + b_lin
        os.append(o)
        hs.append(h)
    return np.stack(os), np.stack(hs)


if __name__ == "__main__":
    input_size, hidden_size, batch, T = 16, 32, 8, 8

    key = jax.random.PRNGKey(0)
    kp, kx = jax.random.split(key)
    w_xh, w_hh, b_h, w_lin, b_lin = init_params(kp, input_size, hidden_size)
    params = prepare_params(w_xh, w_hh, b_h, w_lin, b_lin)   # one-time prep (bf16)

    x_seq = jax.random.normal(kx, (T, batch, input_size), jnp.float32)
    h0 = jnp.zeros((batch, hidden_size), jnp.float32)        # create_new_state()

    o_seq, (h_last,), h_seq = rnn_forward_sequence(x_seq, h0, params, chunk=8)
    jax.block_until_ready(o_seq)
    jax.block_until_ready(h_last)

    o_ref, h_ref = rnn_reference_sequence(x_seq, h0, w_xh, w_hh, b_h,
                                          w_lin, b_lin)
    # bf16 MXU operands (f32 accumulate) per the perf review -> tolerance
    # loosened from 1e-4 to 5e-2 against the exact float64 reference.
    tol = dict(rtol=5e-2, atol=5e-2)
    np.testing.assert_allclose(np.asarray(o_seq), o_ref, **tol)
    np.testing.assert_allclose(np.asarray(h_seq), h_ref, **tol)
    np.testing.assert_allclose(np.asarray(h_last), h_ref[-1], **tol)

    # also exercise the single-step API (matches Rnn.forward(x, (h,)))
    o0, (h1,) = rnn_forward_step(x_seq[0], (h0,), params)
    jax.block_until_ready(o0)
    np.testing.assert_allclose(np.asarray(o0), o_ref[0], **tol)
    np.testing.assert_allclose(np.asarray(h1), h_ref[0], **tol)

    print("KERNEL_OK")
</pallas_src>

<mosaic_0001>
module attributes {stable_mosaic.version = 11 : i64} {
  func.func @rnn_chunk_kernel(%arg0: i32, %arg1: memref<8x8x128xf32, #tpu.memory_space<vmem>>, %arg2: memref<8x128xf32, #tpu.memory_space<vmem>>, %arg3: memref<1x128xf32, #tpu.memory_space<vmem>>, %arg4: memref<1x128xf32, #tpu.memory_space<vmem>>, %arg5: memref<128x128xbf16, #tpu.memory_space<any>>, %arg6: memref<128x128xbf16, #tpu.memory_space<any>>, %arg7: memref<128x128xbf16, #tpu.memory_space<any>>, %arg8: memref<8x8x128xf32, #tpu.memory_space<vmem>>, %arg9: memref<8x8x128xf32, #tpu.memory_space<vmem>>, %arg10: memref<128x128xbf16, #tpu.memory_space<vmem>>, %arg11: memref<128x128xbf16, #tpu.memory_space<vmem>>, %arg12: memref<128x128xbf16, #tpu.memory_space<vmem>>, %arg13: memref<8x8x128xf32, #tpu.memory_space<vmem>>, %arg14: memref<8x128xf32, #tpu.memory_space<vmem>>, %arg15: memref<3x!tpu.dma_semaphore, #tpu.memory_space<semaphore_mem>>) attributes {dimension_semantics = [#tpu.dimension_semantics<arbitrary>], iteration_bounds = array<i64: 1>, scalar_prefetch = 0 : i64, scratch_operands = 6 : i64, tpu.core_type = #tpu.core_type<tc>, window_params = [{transform_indices = @transform_0, window_bounds = array<i64: 8, 8, 128>}, {pipeline_mode = #tpu.pipeline_mode<synchronous>, transform_indices = @transform_1, window_bounds = array<i64: 8, 128>}, {pipeline_mode = #tpu.pipeline_mode<synchronous>, transform_indices = @transform_2, window_bounds = array<i64: 1, 128>}, {pipeline_mode = #tpu.pipeline_mode<synchronous>, transform_indices = @transform_3, window_bounds = array<i64: 1, 128>}, {}, {}, {}, {transform_indices = @transform_7, window_bounds = array<i64: 8, 8, 128>}, {transform_indices = @transform_8, window_bounds = array<i64: 8, 8, 128>}]} {
    %c0_i32 = arith.constant 0 : i32
    %0 = arith.cmpi eq, %arg0, %c0_i32 : i32
    %1 = arith.extui %0 : i1 to i32
    %c0_i32_0 = arith.constant 0 : i32
    %2 = arith.cmpi ne, %1, %c0_i32_0 : i32
    scf.if %2 {
      %c0_i32_110 = arith.constant 0 : i32
      %135 = tpu.memref_slice %arg15[%c0_i32_110] : memref<3x!tpu.dma_semaphore, #tpu.memory_space<semaphore_mem>> -> memref<1x!tpu.dma_semaphore, #tpu.memory_space<semaphore_mem>>
      %136 = tpu.memref_squeeze %135 : memref<1x!tpu.dma_semaphore, #tpu.memory_space<semaphore_mem>> -> memref<!tpu.dma_semaphore, #tpu.memory_space<semaphore_mem>>
      tpu.enqueue_dma source(%arg5 : memref<128x128xbf16, #tpu.memory_space<any>>) target(%arg10 : memref<128x128xbf16, #tpu.memory_space<vmem>>) target_semaphore(%136 : memref<!tpu.dma_semaphore, #tpu.memory_space<semaphore_mem>>)
      %c1_i32_111 = arith.constant 1 : i32
      %137 = tpu.memref_slice %arg15[%c1_i32_111] : memref<3x!tpu.dma_semaphore, #tpu.memory_space<semaphore_mem>> -> memref<1x!tpu.dma_semaphore, #tpu.memory_space<semaphore_mem>>
      %138 = tpu.memref_squeeze %137 : memref<1x!tpu.dma_semaphore, #tpu.memory_space<semaphore_mem>> -> memref<!tpu.dma_semaphore, #tpu.memory_space<semaphore_mem>>
      tpu.enqueue_dma source(%arg6 : memref<128x128xbf16, #tpu.memory_space<any>>) target(%arg11 : memref<128x128xbf16, #tpu.memory_space<vmem>>) target_semaphore(%138 : memref<!tpu.dma_semaphore, #tpu.memory_space<semaphore_mem>>)
      %c2_i32_112 = arith.constant 2 : i32
      %139 = tpu.memref_slice %arg15[%c2_i32_112] : memref<3x!tpu.dma_semaphore, #tpu.memory_space<semaphore_mem>> -> memref<1x!tpu.dma_semaphore, #tpu.memory_space<semaphore_mem>>
      %140 = tpu.memref_squeeze %139 : memref<1x!tpu.dma_semaphore, #tpu.memory_space<semaphore_mem>> -> memref<!tpu.dma_semaphore, #tpu.memory_space<semaphore_mem>>
      tpu.enqueue_dma source(%arg7 : memref<128x128xbf16, #tpu.memory_space<any>>) target(%arg12 : memref<128x128xbf16, #tpu.memory_space<vmem>>) target_semaphore(%140 : memref<!tpu.dma_semaphore, #tpu.memory_space<semaphore_mem>>)
      %c0_i32_113 = arith.constant 0 : i32
      %141 = tpu.memref_slice %arg15[%c0_i32_113] : memref<3x!tpu.dma_semaphore, #tpu.memory_space<semaphore_mem>> -> memref<1x!tpu.dma_semaphore, #tpu.memory_space<semaphore_mem>>
      %142 = tpu.memref_squeeze %141 : memref<1x!tpu.dma_semaphore, #tpu.memory_space<semaphore_mem>> -> memref<!tpu.dma_semaphore, #tpu.memory_space<semaphore_mem>>
      tpu.wait_dma2 semaphore(%142 : memref<!tpu.dma_semaphore, #tpu.memory_space<semaphore_mem>>) src(%arg5 : memref<128x128xbf16, #tpu.memory_space<any>>) dst(%arg10 : memref<128x128xbf16, #tpu.memory_space<vmem>>)
      %c1_i32_114 = arith.constant 1 : i32
      %143 = tpu.memref_slice %arg15[%c1_i32_114] : memref<3x!tpu.dma_semaphore, #tpu.memory_space<semaphore_mem>> -> memref<1x!tpu.dma_semaphore, #tpu.memory_space<semaphore_mem>>
      %144 = tpu.memref_squeeze %143 : memref<1x!tpu.dma_semaphore, #tpu.memory_space<semaphore_mem>> -> memref<!tpu.dma_semaphore, #tpu.memory_space<semaphore_mem>>
      tpu.wait_dma2 semaphore(%144 : memref<!tpu.dma_semaphore, #tpu.memory_space<semaphore_mem>>) src(%arg6 : memref<128x128xbf16, #tpu.memory_space<any>>) dst(%arg11 : memref<128x128xbf16, #tpu.memory_space<vmem>>)
      %c2_i32_115 = arith.constant 2 : i32
      %145 = tpu.memref_slice %arg15[%c2_i32_115] : memref<3x!tpu.dma_semaphore, #tpu.memory_space<semaphore_mem>> -> memref<1x!tpu.dma_semaphore, #tpu.memory_space<semaphore_mem>>
      %146 = tpu.memref_squeeze %145 : memref<1x!tpu.dma_semaphore, #tpu.memory_space<semaphore_mem>> -> memref<!tpu.dma_semaphore, #tpu.memory_space<semaphore_mem>>
      tpu.wait_dma2 semaphore(%146 : memref<!tpu.dma_semaphore, #tpu.memory_space<semaphore_mem>>) src(%arg7 : memref<128x128xbf16, #tpu.memory_space<any>>) dst(%arg12 : memref<128x128xbf16, #tpu.memory_space<vmem>>)
      %c0_116 = arith.constant 0 : index
      %c0_117 = arith.constant 0 : index
      %147 = vector.load %arg2[%c0_116, %c0_117] : memref<8x128xf32, #tpu.memory_space<vmem>>, vector<8x128xf32>
      %c0_118 = arith.constant 0 : index
      %c0_119 = arith.constant 0 : index
      %148 = vector.load %arg14[%c0_118, %c0_119] : memref<8x128xf32, #tpu.memory_space<vmem>>, vector<8x128xf32>
      tpu.vector_store %arg14[%c0_118, %c0_119], %147 {strides = array<i32>} : memref<8x128xf32, #tpu.memory_space<vmem>>, vector<8x128xf32>,
    } else {
    }
    %c0 = arith.constant 0 : index
    %c0_1 = arith.constant 0 : index
    %c0_2 = arith.constant 0 : index
    %3 = vector.load %arg1[%c0, %c0_1, %c0_2] : memref<8x8x128xf32, #tpu.memory_space<vmem>>, vector<8x8x128xf32>
    %4 = vector.shape_cast %3 : vector<8x8x128xf32> to vector<64x128xf32>
    %5 = arith.truncf %4 : vector<64x128xf32> to vector<64x128xbf16>
    %c0_3 = arith.constant 0 : index
    %c0_4 = arith.constant 0 : index
    %6 = vector.load %arg10[%c0_3, %c0_4] : memref<128x128xbf16, #tpu.memory_space<vmem>>, vector<128x128xbf16>
    %cst = arith.constant dense<0.000000e+00> : vector<64x128xf32>
    %7 = tpu.matmul %5, %6, %cst {dimension_numbers = #tpu.dot_dimension_numbers<[1], [0], [0], [1], [0, 0, 1, 1], [], []>} : vector<64x128xbf16>, vector<128x128xbf16>, vector<64x128xf32> -> vector<64x128xf32>
    %c0_5 = arith.constant 0 : index
    %c0_6 = arith.constant 0 : index
    %8 = vector.load %arg3[%c0_5, %c0_6] : memref<1x128xf32, #tpu.memory_space<vmem>>, vector<1x128xf32>
    %9 = vector.broadcast %8 : vector<1x128xf32> to vector<64x128xf32>
    %10 = arith.addf %7, %9 : vector<64x128xf32>
    %11 = vector.shape_cast %10 : vector<64x128xf32> to vector<8x8x128xf32>
    %c0_7 = arith.constant 0 : index
    %c0_8 = arith.constant 0 : index
    %c0_9 = arith.constant 0 : index
    %12 = vector.load %arg13[%c0_7, %c0_8, %c0_9] : memref<8x8x128xf32, #tpu.memory_space<vmem>>, vector<8x8x128xf32>
    tpu.vector_store %arg13[%c0_7, %c0_8, %c0_9], %11 {strides = array<i32>} : memref<8x8x128xf32, #tpu.memory_space<vmem>>, vector<8x8x128xf32>,
    %c0_i32_10 = arith.constant 0 : i32
    %13 = arith.index_cast %c0_i32_10 : i32 to index
    %c0_11 = arith.constant 0 : index
    %c0_12 = arith.constant 0 : index
    %14 = vector.load %arg13[%13, %c0_11, %c0_12] : memref<8x8x128xf32, #tpu.memory_space<vmem>>, vector<1x8x128xf32>
    %15 = vector.shape_cast %14 : vector<1x8x128xf32> to vector<8x128xf32>
    %c0_13 = arith.constant 0 : index
    %c0_14 = arith.constant 0 : index
    %16 = vector.load %arg14[%c0_13, %c0_14] : memref<8x128xf32, #tpu.memory_space<vmem>>, vector<8x128xf32>
    %17 = arith.truncf %16 : vector<8x128xf32> to vector<8x128xbf16>
    %c0_15 = arith.constant 0 : index
    %c0_16 = arith.constant 0 : index
    %18 = vector.load %arg11[%c0_15, %c0_16] : memref<128x128xbf16, #tpu.memory_space<vmem>>, vector<128x128xbf16>
    %cst_17 = arith.constant dense<0.000000e+00> : vector<8x128xf32>
    %19 = tpu.matmul %17, %18, %cst_17 {dimension_numbers = #tpu.dot_dimension_numbers<[1], [0], [0], [1], [0, 0, 1, 1], [], []>} : vector<8x128xbf16>, vector<128x128xbf16>, vector<8x128xf32> -> vector<8x128xf32>
    %20 = arith.addf %15, %19 : vector<8x128xf32>
    %21 = math.tanh %20 : vector<8x128xf32>
    %c0_18 = arith.constant 0 : index
    %c0_19 = arith.constant 0 : index
    %22 = vector.load %arg14[%c0_18, %c0_19] : memref<8x128xf32, #tpu.memory_space<vmem>>, vector<8x128xf32>
    tpu.vector_store %arg14[%c0_18, %c0_19], %21 {strides = array<i32>} : memref<8x128xf32, #tpu.memory_space<vmem>>, vector<8x128xf32>,
    %23 = arith.index_cast %c0_i32_10 : i32 to index
    %c0_20 = arith.constant 0 : index
    %c0_21 = arith.constant 0 : index
    %24 = vector.load %arg8[%23, %c0_20, %c0_21] : memref<8x8x128xf32, #tpu.memory_space<vmem>>, vector<1x8x128xf32>
    %25 = vector.shape_cast %24 : vector<1x8x128xf32> to vector<8x128xf32>
    %26 = vector.shape_cast %21 : vector<8x128xf32> to vector<1x8x128xf32>
    tpu.vector_store %arg8[%23, %c0_20, %c0_21], %26 {strides = array<i32>} : memref<8x8x128xf32, #tpu.memory_space<vmem>>, vector<1x8x128xf32>,
    %c1_i32 = arith.constant 1 : i32
    %27 = arith.index_cast %c1_i32 : i32 to index
    %c0_22 = arith.constant 0 : index
    %c0_23 = arith.constant 0 : index
    %28 = vector.load %arg13[%27, %c0_22, %c0_23] : memref<8x8x128xf32, #tpu.memory_space<vmem>>, vector<1x8x128xf32>
    %29 = vector.shape_cast %28 : vector<1x8x128xf32> to vector<8x128xf32>
    %c0_24 = arith.constant 0 : index
    %c0_25 = arith.constant 0 : index
    %30 = vector.load %arg14[%c0_24, %c0_25] : memref<8x128xf32, #tpu.memory_space<vmem>>, vector<8x128xf32>
    %31 = arith.truncf %30 : vector<8x128xf32> to vector<8x128xbf16>
    %c0_26 = arith.constant 0 : index
    %c0_27 = arith.constant 0 : index
    %32 = vector.load %arg11[%c0_26, %c0_27] : memref<128x128xbf16, #tpu.memory_space<vmem>>, vector<128x128xbf16>
    %cst_28 = arith.constant dense<0.000000e+00> : vector<8x128xf32>
    %33 = tpu.matmul %31, %32, %cst_28 {dimension_numbers = #tpu.dot_dimension_numbers<[1], [0], [0], [1], [0, 0, 1, 1], [], []>} : vector<8x128xbf16>, vector<128x128xbf16>, vector<8x128xf32> -> vector<8x128xf32>
    %34 = arith.addf %29, %33 : vector<8x128xf32>
    %35 = math.tanh %34 : vector<8x128xf32>
    %c0_29 = arith.constant 0 : index
    %c0_30 = arith.constant 0 : index
    %36 = vector.load %arg14[%c0_29, %c0_30] : memref<8x128xf32, #tpu.memory_space<vmem>>, vector<8x128xf32>
    tpu.vector_store %arg14[%c0_29, %c0_30], %35 {strides = array<i32>} : memref<8x128xf32, #tpu.memory_space<vmem>>, vector<8x128xf32>,
    %37 = arith.index_cast %c1_i32 : i32 to index
    %c0_31 = arith.constant 0 : index
    %c0_32 = arith.constant 0 : index
    %38 = vector.load %arg8[%37, %c0_31, %c0_32] : memref<8x8x128xf32, #tpu.memory_space<vmem>>, vector<1x8x128xf32>
    %39 = vector.shape_cast %38 : vector<1x8x128xf32> to vector<8x128xf32>
    %40 = vector.shape_cast %35 : vector<8x128xf32> to vector<1x8x128xf32>
    tpu.vector_store %arg8[%37, %c0_31, %c0_32], %40 {strides = array<i32>} : memref<8x8x128xf32, #tpu.memory_space<vmem>>, vector<1x8x128xf32>,
    %c2_i32 = arith.constant 2 : i32
    %41 = arith.index_cast %c2_i32 : i32 to index
    %c0_33 = arith.constant 0 : index
    %c0_34 = arith.constant 0 : index
    %42 = vector.load %arg13[%41, %c0_33, %c0_34] : memref<8x8x128xf32, #tpu.memory_space<vmem>>, vector<1x8x128xf32>
    %43 = vector.shape_cast %42 : vector<1x8x128xf32> to vector<8x128xf32>
    %c0_35 = arith.constant 0 : index
    %c0_36 = arith.constant 0 : index
    %44 = vector.load %arg14[%c0_35, %c0_36] : memref<8x128xf32, #tpu.memory_space<vmem>>, vector<8x128xf32>
    %45 = arith.truncf %44 : vector<8x128xf32> to vector<8x128xbf16>
    %c0_37 = arith.constant 0 : index
    %c0_38 = arith.constant 0 : index
    %46 = vector.load %arg11[%c0_37, %c0_38] : memref<128x128xbf16, #tpu.memory_space<vmem>>, vector<128x128xbf16>
    %cst_39 = arith.constant dense<0.000000e+00> : vector<8x128xf32>
    %47 = tpu.matmul %45, %46, %cst_39 {dimension_numbers = #tpu.dot_dimension_numbers<[1], [0], [0], [1], [0, 0, 1, 1], [], []>} : vector<8x128xbf16>, vector<128x128xbf16>, vector<8x128xf32> -> vector<8x128xf32>
    %48 = arith.addf %43, %47 : vector<8x128xf32>
    %49 = math.tanh %48 : vector<8x128xf32>
    %c0_40 = arith.constant 0 : index
    %c0_41 = arith.constant 0 : index
    %50 = vector.load %arg14[%c0_40, %c0_41] : memref<8x128xf32, #tpu.memory_space<vmem>>, vector<8x128xf32>
    tpu.vector_store %arg14[%c0_40, %c0_41], %49 {strides = array<i32>} : memref<8x128xf32, #tpu.memory_space<vmem>>, vector<8x128xf32>,
    %51 = arith.index_cast %c2_i32 : i32 to index
    %c0_42 = arith.constant 0 : index
    %c0_43 = arith.constant 0 : index
    %52 = vector.load %arg8[%51, %c0_42, %c0_43] : memref<8x8x128xf32, #tpu.memory_space<vmem>>, vector<1x8x128xf32>
    %53 = vector.shape_cast %52 : vector<1x8x128xf32> to vector<8x128xf32>
    %54 = vector.shape_cast %49 : vector<8x128xf32> to vector<1x8x128xf32>
    tpu.vector_store %arg8[%51, %c0_42, %c0_43], %54 {strides = array<i32>} : memref<8x8x128xf32, #tpu.memory_space<vmem>>, vector<1x8x128xf32>,
    %c3_i32 = arith.constant 3 : i32
    %55 = arith.index_cast %c3_i32 : i32 to index
    %c0_44 = arith.constant 0 : index
    %c0_45 = arith.constant 0 : index
    %56 = vector.load %arg13[%55, %c0_44, %c0_45] : memref<8x8x128xf32, #tpu.memory_space<vmem>>, vector<1x8x128xf32>
    %57 = vector.shape_cast %56 : vector<1x8x128xf32> to vector<8x128xf32>
    %c0_46 = arith.constant 0 : index
    %c0_47 = arith.constant 0 : index
    %58 = vector.load %arg14[%c0_46, %c0_47] : memref<8x128xf32, #tpu.memory_space<vmem>>, vector<8x128xf32>
    %59 = arith.truncf %58 : vector<8x128xf32> to vector<8x128xbf16>
    %c0_48 = arith.constant 0 : index
    %c0_49 = arith.constant 0 : index
    %60 = vector.load %arg11[%c0_48, %c0_49] : memref<128x128xbf16, #tpu.memory_space<vmem>>, vector<128x128xbf16>
    %cst_50 = arith.constant dense<0.000000e+00> : vector<8x128xf32>
    %61 = tpu.matmul %59, %60, %cst_50 {dimension_numbers = #tpu.dot_dimension_numbers<[1], [0], [0], [1], [0, 0, 1, 1], [], []>} : vector<8x128xbf16>, vector<128x128xbf16>, vector<8x128xf32> -> vector<8x128xf32>
    %62 = arith.addf %57, %61 : vector<8x128xf32>
    %63 = math.tanh %62 : vector<8x128xf32>
    %c0_51 = arith.constant 0 : index
    %c0_52 = arith.constant 0 : index
    %64 = vector.load %arg14[%c0_51, %c0_52] : memref<8x128xf32, #tpu.memory_space<vmem>>, vector<8x128xf32>
    tpu.vector_store %arg14[%c0_51, %c0_52], %63 {strides = array<i32>} : memref<8x128xf32, #tpu.memory_space<vmem>>, vector<8x128xf32>,
    %65 = arith.index_cast %c3_i32 : i32 to index
    %c0_53 = arith.constant 0 : index
    %c0_54 = arith.constant 0 : index
    %66 = vector.load %arg8[%65, %c0_53, %c0_54] : memref<8x8x128xf32, #tpu.memory_space<vmem>>, vector<1x8x128xf32>
    %67 = vector.shape_cast %66 : vector<1x8x128xf32> to vector<8x128xf32>
    %68 = vector.shape_cast %63 : vector<8x128xf32> to vector<1x8x128xf32>
    tpu.vector_store %arg8[%65, %c0_53, %c0_54], %68 {strides = array<i32>} : memref<8x8x128xf32, #tpu.memory_space<vmem>>, vector<1x8x128xf32>,
    %c4_i32 = arith.constant 4 : i32
    %69 = arith.index_cast %c4_i32 : i32 to index
    %c0_55 = arith.constant 0 : index
    %c0_56 = arith.constant 0 : index
    %70 = vector.load %arg13[%69, %c0_55, %c0_56] : memref<8x8x128xf32, #tpu.memory_space<vmem>>, vector<1x8x128xf32>
    %71 = vector.shape_cast %70 : vector<1x8x128xf32> to vector<8x128xf32>
    %c0_57 = arith.constant 0 : index
    %c0_58 = arith.constant 0 : index
    %72 = vector.load %arg14[%c0_57, %c0_58] : memref<8x128xf32, #tpu.memory_space<vmem>>, vector<8x128xf32>
    %73 = arith.truncf %72 : vector<8x128xf32> to vector<8x128xbf16>
    %c0_59 = arith.constant 0 : index
    %c0_60 = arith.constant 0 : index
    %74 = vector.load %arg11[%c0_59, %c0_60] : memref<128x128xbf16, #tpu.memory_space<vmem>>, vector<128x128xbf16>
    %cst_61 = arith.constant dense<0.000000e+00> : vector<8x128xf32>
    %75 = tpu.matmul %73, %74, %cst_61 {dimension_numbers = #tpu.dot_dimension_numbers<[1], [0], [0], [1], [0, 0, 1, 1], [], []>} : vector<8x128xbf16>, vector<128x128xbf16>, vector<8x128xf32> -> vector<8x128xf32>
    %76 = arith.addf %71, %75 : vector<8x128xf32>
    %77 = math.tanh %76 : vector<8x128xf32>
    %c0_62 = arith.constant 0 : index
    %c0_63 = arith.constant 0 : index
    %78 = vector.load %arg14[%c0_62, %c0_63] : memref<8x128xf32, #tpu.memory_space<vmem>>, vector<8x128xf32>
    tpu.vector_store %arg14[%c0_62, %c0_63], %77 {strides = array<i32>} : memref<8x128xf32, #tpu.memory_space<vmem>>, vector<8x128xf32>,
    %79 = arith.index_cast %c4_i32 : i32 to index
    %c0_64 = arith.constant 0 : index
    %c0_65 = arith.constant 0 : index
    %80 = vector.load %arg8[%79, %c0_64, %c0_65] : memref<8x8x128xf32, #tpu.memory_space<vmem>>, vector<1x8x128xf32>
    %81 = vector.shape_cast %80 : vector<1x8x128xf32> to vector<8x128xf32>
    %82 = vector.shape_cast %77 : vector<8x128xf32> to vector<1x8x128xf32>
    tpu.vector_store %arg8[%79, %c0_64, %c0_65], %82 {strides = array<i32>} : memref<8x8x128xf32, #tpu.memory_space<vmem>>, vector<1x8x128xf32>,
    %c5_i32 = arith.constant 5 : i32
    %83 = arith.index_cast %c5_i32 : i32 to index
    %c0_66 = arith.constant 0 : index
    %c0_67 = arith.constant 0 : index
    %84 = vector.load %arg13[%83, %c0_66, %c0_67] : memref<8x8x128xf32, #tpu.memory_space<vmem>>, vector<1x8x128xf32>
    %85 = vector.shape_cast %84 : vector<1x8x128xf32> to vector<8x128xf32>
    %c0_68 = arith.constant 0 : index
    %c0_69 = arith.constant 0 : index
    %86 = vector.load %arg14[%c0_68, %c0_69] : memref<8x128xf32, #tpu.memory_space<vmem>>, vector<8x128xf32>
    %87 = arith.truncf %86 : vector<8x128xf32> to vector<8x128xbf16>
    %c0_70 = arith.constant 0 : index
    %c0_71 = arith.constant 0 : index
    %88 = vector.load %arg11[%c0_70, %c0_71] : memref<128x128xbf16, #tpu.memory_space<vmem>>, vector<128x128xbf16>
    %cst_72 = arith.constant dense<0.000000e+00> : vector<8x128xf32>
    %89 = tpu.matmul %87, %88, %cst_72 {dimension_numbers = #tpu.dot_dimension_numbers<[1], [0], [0], [1], [0, 0, 1, 1], [], []>} : vector<8x128xbf16>, vector<128x128xbf16>, vector<8x128xf32> -> vector<8x128xf32>
    %90 = arith.addf %85, %89 : vector<8x128xf32>
    %91 = math.tanh %90 : vector<8x128xf32>
    %c0_73 = arith.constant 0 : index
    %c0_74 = arith.constant 0 : index
    %92 = vector.load %arg14[%c0_73, %c0_74] : memref<8x128xf32, #tpu.memory_space<vmem>>, vector<8x128xf32>
    tpu.vector_store %arg14[%c0_73, %c0_74], %91 {strides = array<i32>} : memref<8x128xf32, #tpu.memory_space<vmem>>, vector<8x128xf32>,
    %93 = arith.index_cast %c5_i32 : i32 to index
    %c0_75 = arith.constant 0 : index
    %c0_76 = arith.constant 0 : index
    %94 = vector.load %arg8[%93, %c0_75, %c0_76] : memref<8x8x128xf32, #tpu.memory_space<vmem>>, vector<1x8x128xf32>
    %95 = vector.shape_cast %94 : vector<1x8x128xf32> to vector<8x128xf32>
    %96 = vector.shape_cast %91 : vector<8x128xf32> to vector<1x8x128xf32>
    tpu.vector_store %arg8[%93, %c0_75, %c0_76], %96 {strides = array<i32>} : memref<8x8x128xf32, #tpu.memory_space<vmem>>, vector<1x8x128xf32>,
    %c6_i32 = arith.constant 6 : i32
    %97 = arith.index_cast %c6_i32 : i32 to index
    %c0_77 = arith.constant 0 : index
    %c0_78 = arith.constant 0 : index
    %98 = vector.load %arg13[%97, %c0_77, %c0_78] : memref<8x8x128xf32, #tpu.memory_space<vmem>>, vector<1x8x128xf32>
    %99 = vector.shape_cast %98 : vector<1x8x128xf32> to vector<8x128xf32>
    %c0_79 = arith.constant 0 : index
    %c0_80 = arith.constant 0 : index
    %100 = vector.load %arg14[%c0_79, %c0_80] : memref<8x128xf32, #tpu.memory_space<vmem>>, vector<8x128xf32>
    %101 = arith.truncf %100 : vector<8x128xf32> to vector<8x128xbf16>
    %c0_81 = arith.constant 0 : index
    %c0_82 = arith.constant 0 : index
    %102 = vector.load %arg11[%c0_81, %c0_82] : memref<128x128xbf16, #tpu.memory_space<vmem>>, vector<128x128xbf16>
    %cst_83 = arith.constant dense<0.000000e+00> : vector<8x128xf32>
    %103 = tpu.matmul %101, %102, %cst_83 {dimension_numbers = #tpu.dot_dimension_numbers<[1], [0], [0], [1], [0, 0, 1, 1], [], []>} : vector<8x128xbf16>, vector<128x128xbf16>, vector<8x128xf32> -> vector<8x128xf32>
    %104 = arith.addf %99, %103 : vector<8x128xf32>
    %105 = math.tanh %104 : vector<8x128xf32>
    %c0_84 = arith.constant 0 : index
    %c0_85 = arith.constant 0 : index
    %106 = vector.load %arg14[%c0_84, %c0_85] : memref<8x128xf32, #tpu.memory_space<vmem>>, vector<8x128xf32>
    tpu.vector_store %arg14[%c0_84, %c0_85], %105 {strides = array<i32>} : memref<8x128xf32, #tpu.memory_space<vmem>>, vector<8x128xf32>,
    %107 = arith.index_cast %c6_i32 : i32 to index
    %c0_86 = arith.constant 0 : index
    %c0_87 = arith.constant 0 : index
    %108 = vector.load %arg8[%107, %c0_86, %c0_87] : memref<8x8x128xf32, #tpu.memory_space<vmem>>, vector<1x8x128xf32>
    %109 = vector.shape_cast %108 : vector<1x8x128xf32> to vector<8x128xf32>
    %110 = vector.shape_cast %105 : vector<8x128xf32> to vector<1x8x128xf32>
    tpu.vector_store %arg8[%107, %c0_86, %c0_87], %110 {strides = array<i32>} : memref<8x8x128xf32, #tpu.memory_space<vmem>>, vector<1x8x128xf32>,
    %c7_i32 = arith.constant 7 : i32
    %111 = arith.index_cast %c7_i32 : i32 to index
    %c0_88 = arith.constant 0 : index
    %c0_89 = arith.constant 0 : index
    %112 = vector.load %arg13[%111, %c0_88, %c0_89] : memref<8x8x128xf32, #tpu.memory_space<vmem>>, vector<1x8x128xf32>
    %113 = vector.shape_cast %112 : vector<1x8x128xf32> to vector<8x128xf32>
    %c0_90 = arith.constant 0 : index
    %c0_91 = arith.constant 0 : index
    %114 = vector.load %arg14[%c0_90, %c0_91] : memref<8x128xf32, #tpu.memory_space<vmem>>, vector<8x128xf32>
    %115 = arith.truncf %114 : vector<8x128xf32> to vector<8x128xbf16>
    %c0_92 = arith.constant 0 : index
    %c0_93 = arith.constant 0 : index
    %116 = vector.load %arg11[%c0_92, %c0_93] : memref<128x128xbf16, #tpu.memory_space<vmem>>, vector<128x128xbf16>
    %cst_94 = arith.constant dense<0.000000e+00> : vector<8x128xf32>
    %117 = tpu.matmul %115, %116, %cst_94 {dimension_numbers = #tpu.dot_dimension_numbers<[1], [0], [0], [1], [0, 0, 1, 1], [], []>} : vector<8x128xbf16>, vector<128x128xbf16>, vector<8x128xf32> -> vector<8x128xf32>
    %118 = arith.addf %113, %117 : vector<8x128xf32>
    %119 = math.tanh %118 : vector<8x128xf32>
    %c0_95 = arith.constant 0 : index
    %c0_96 = arith.constant 0 : index
    %120 = vector.load %arg14[%c0_95, %c0_96] : memref<8x128xf32, #tpu.memory_space<vmem>>, vector<8x128xf32>
    tpu.vector_store %arg14[%c0_95, %c0_96], %119 {strides = array<i32>} : memref<8x128xf32, #tpu.memory_space<vmem>>, vector<8x128xf32>,
    %121 = arith.index_cast %c7_i32 : i32 to index
    %c0_97 = arith.constant 0 : index
    %c0_98 = arith.constant 0 : index
    %122 = vector.load %arg8[%121, %c0_97, %c0_98] : memref<8x8x128xf32, #tpu.memory_space<vmem>>, vector<1x8x128xf32>
    %123 = vector.shape_cast %122 : vector<1x8x128xf32> to vector<8x128xf32>
    %124 = vector.shape_cast %119 : vector<8x128xf32> to vector<1x8x128xf32>
    tpu.vector_store %arg8[%121, %c0_97, %c0_98], %124 {strides = array<i32>} : memref<8x8x128xf32, #tpu.memory_space<vmem>>, vector<1x8x128xf32>,
    %c8_i32 = arith.constant 8 : i32
    %c0_99 = arith.constant 0 : index
    %c0_100 = arith.constant 0 : index
    %c0_101 = arith.constant 0 : index
    %125 = vector.load %arg8[%c0_99, %c0_100, %c0_101] : memref<8x8x128xf32, #tpu.memory_space<vmem>>, vector<8x8x128xf32>
    %126 = vector.shape_cast %125 : vector<8x8x128xf32> to vector<64x128xf32>
    %127 = arith.truncf %126 : vector<64x128xf32> to vector<64x128xbf16>
    %c0_102 = arith.constant 0 : index
    %c0_103 = arith.constant 0 : index
    %128 = vector.load %arg12[%c0_102, %c0_103] : memref<128x128xbf16, #tpu.memory_space<vmem>>, vector<128x128xbf16>
    %cst_104 = arith.constant dense<0.000000e+00> : vector<64x128xf32>
    %129 = tpu.matmul %127, %128, %cst_104 {dimension_numbers = #tpu.dot_dimension_numbers<[1], [0], [0], [1], [0, 0, 1, 1], [], []>} : vector<64x128xbf16>, vector<128x128xbf16>, vector<64x128xf32> -> vector<64x128xf32>
    %c0_105 = arith.constant 0 : index
    %c0_106 = arith.constant 0 : index
    %130 = vector.load %arg4[%c0_105, %c0_106] : memref<1x128xf32, #tpu.memory_space<vmem>>, vector<1x128xf32>
    %131 = vector.broadcast %130 : vector<1x128xf32> to vector<64x128xf32>
    %132 = arith.addf %129, %131 : vector<64x128xf32>
    %133 = vector.shape_cast %132 : vector<64x128xf32> to vector<8x8x128xf32>
    %c0_107 = arith.constant 0 : index
    %c0_108 = arith.constant 0 : index
    %c0_109 = arith.constant 0 : index
    %134 = vector.load %arg9[%c0_107, %c0_108, %c0_109] : memref<8x8x128xf32, #tpu.memory_space<vmem>>, vector<8x8x128xf32>
    tpu.vector_store %arg9[%c0_107, %c0_108, %c0_109], %133 {strides = array<i32>} : memref<8x8x128xf32, #tpu.memory_space<vmem>>, vector<8x8x128xf32>,
    return
  }
  func.func @transform_0(%arg0: i32) -> (i32, i32, i32) {
    %c0_i32 = arith.constant 0 : i32
    %c0_i32_0 = arith.constant 0 : i32
    %c0_i32_1 = arith.constant 0 : i32
    return %arg0, %c0_i32, %c0_i32_0 : i32, i32, i32
  }
  func.func @transform_1(%arg0: i32) -> (i32, i32) {
    %c0_i32 = arith.constant 0 : i32
    %c0_i32_0 = arith.constant 0 : i32
    %c0_i32_1 = arith.constant 0 : i32
    return %c0_i32, %c0_i32_0 : i32, i32
  }
  func.func @transform_2(%arg0: i32) -> (i32, i32) {
    %c0_i32 = arith.constant 0 : i32
    %c0_i32_0 = arith.constant 0 : i32
    %c0_i32_1 = arith.constant 0 : i32
    return %c0_i32, %c0_i32_0 : i32, i32
  }
  func.func @transform_3(%arg0: i32) -> (i32, i32) {
    %c0_i32 = arith.constant 0 : i32
    %c0_i32_0 = arith.constant 0 : i32
    %c0_i32_1 = arith.constant 0 : i32
    return %c0_i32, %c0_i32_0 : i32, i32
  }
  func.func @transform_7(%arg0: i32) -> (i32, i32, i32) {
    %c0_i32 = arith.constant 0 : i32
    %c0_i32_0 = arith.constant 0 : i32
    %c0_i32_1 = arith.constant 0 : i32
    return %arg0, %c0_i32, %c0_i32_0 : i32, i32, i32
  }
  func.func @transform_8(%arg0: i32) -> (i32, i32, i32) {
    %c0_i32 = arith.constant 0 : i32
    %c0_i32_0 = arith.constant 0 : i32
    %c0_i32_1 = arith.constant 0 : i32
    return %arg0, %c0_i32, %c0_i32_0 : i32, i32, i32
  }
}

</mosaic_0001>

<llo_original>
// kernel: tpu_custom_call.1
$region0: #{tpu_custom_call.1}
  #allocation0 [shape = 'u32[]', space=smem, size = 0x4, offset = 0x4, fixed_abs, tag = 'smem constant byte address 0x4 - core index']
  #allocation1 [shape = 'u32[72,128]{1,0:T(1,128)}', space=vmem, size = 0x9000, scoped, tag = 'internal scratch']
  #allocation2 [shape = 'bf16[128,128]{1,0:T(8,128)(2,1)}', space=vmem, size = 0x8000, scoped, tag = 'scratch operand']
  #allocation3 [shape = 'bf16[128,128]{1,0:T(8,128)(2,1)}', space=vmem, size = 0x8000, scoped, tag = 'scratch operand']
  #allocation4 [shape = 'bf16[128,128]{1,0:T(8,128)(2,1)}', space=vmem, size = 0x8000, scoped, tag = 'scratch operand']
  #allocation5 [shape = 'f32[8,8,128]{2,1,0:T(8,128)}', space=vmem, size = 0x8000, scoped, tag = 'scratch operand']
  #allocation6 [shape = 'f32[8,128]{1,0:T(8,128)}', space=vmem, size = 0x1000, scoped, tag = 'scratch operand']
  #allocation7 [shape = 's32[3]{0}', space=sflag, size = 0xc, scoped, tag = 'scratch operand']
  #allocation16 [shape = 's32[]', space=sflag, size = 0x4, offset = 0, fixed_abs, tag = 'sflag constant byte address 0x0 - dummy sync flag']
  #allocation17 [shape = 's32[]', space=sflag, size = 0x4, offset = 0, fixed_abs, tag = 'sflag constant byte address 0x0 - dummy sync flag']
  #allocation18 [shape = 'u32[]', space=smem, size = 0x4, offset = 0x44, fixed_abs, tag = 'smem constant byte address 0x44 - assertion arg 0']
  #allocation19 [shape = 'u32[]', space=smem, size = 0x4, offset = 0x48, fixed_abs, tag = 'smem constant byte address 0x48 - assertion arg 1']
  #allocation20 [shape = 's32[]', space=sflag, size = 0x4, offset = 0, fixed_abs, tag = 'sflag constant byte address 0x0 - dummy sync flag']
  #allocation21 [shape = 's32[]', space=sflag, size = 0x4, offset = 0, fixed_abs, tag = 'sflag constant byte address 0x0 - dummy sync flag']
  #allocation22 [shape = 's32[]', space=sflag, size = 0x4, offset = 0, fixed_abs, tag = 'sflag constant byte address 0x0 - dummy sync flag']
  #allocation23 [shape = 's32[]', space=sflag, size = 0x4, offset = 0, fixed_abs, tag = 'sflag constant byte address 0x0 - dummy sync flag']
  %s0 = inlined_call_operand.hbm [shape: f32[8,8,128], index: 0, kind: input, shape index: {}]
  %s1 = inlined_call_operand.hbm [shape: f32[8,128], index: 1, kind: input, shape index: {}]
  %s2 = inlined_call_operand.vmem [shape: f32[1,128], index: 2, kind: input, shape index: {}]
  %s3 = inlined_call_operand.vmem [shape: f32[1,128], index: 3, kind: input, shape index: {}]
  %s4 = inlined_call_operand.hbm [shape: bf16[128,128], index: 4, kind: input, shape index: {}]
  %s5 = inlined_call_operand.hbm [shape: bf16[128,128], index: 5, kind: input, shape index: {}]
  %s6 = inlined_call_operand.hbm [shape: bf16[128,128], index: 6, kind: input, shape index: {}]
  %s7 = inlined_call_operand.hbm [shape: f32[8,8,128], index: 7, kind: output, shape index: {0}]
  %s8 = inlined_call_operand.hbm [shape: f32[8,8,128], index: 8, kind: output, shape index: {1}]
  %9 = xla_tuple %s7, %s8
  %s10 = sld [smem:[#allocation0]]
  $region58: #{tpu_custom_call.1} parent=0
    _
  %s12 = ssub.s32 1, %s10
  %s13 = scalar_select 0, %s12, %s10
  $region1: #{tpu_custom_call.1} parent=0
    #allocation8 [shape = 'u8[32768]{0}', space=vmem, size = 0x8000, scoped, tag = 'input window, operand 0, single buffered']
    #allocation9 [shape = 's32[1]{0}', space=sflag, size = 0x4, scoped, tag = 'scoped memory for tpu_custom_call.1']
    #allocation10 [shape = 's32[1]{0}', space=sflag, size = 0x4, scoped, tag = 'scoped memory for tpu_custom_call.1']
    #allocation11 [shape = 'u8[4096]{0}', space=vmem, size = 0x1000, scoped, tag = 'input window, operand 1, single buffered']
    #allocation12 [shape = 's32[1]{0}', space=sflag, size = 0x4, scoped, tag = 'scoped memory for tpu_custom_call.1']
    #allocation13 [shape = 'u8[32768]{0}', space=vmem, size = 0x8000, scoped, tag = 'output window, operand 0, single buffered']
    #allocation14 [shape = 'u8[32768]{0}', space=vmem, size = 0x8000, scoped, tag = 'output window, operand 1, single buffered']
    #allocation15 [shape = 's32[1]{0}', space=sflag, size = 0x4, scoped, tag = 'scoped memory for tpu_custom_call.1']
    %14 = vsyncpa [#allocation9], 0
    %15 = vsyncpa [#allocation12], 0
    %16 = vsyncpa [#allocation10], 0
    %17 = vsyncpa [#allocation15], 0
    // Predicated region
    $region2: #{tpu_custom_call.1} parent=1 // pred_check
      _
    $region3: #{tpu_custom_call.1} parent=1 // pred_check_branch
      %19 = sbr.rel (0) target = $region5
    $region4: #{tpu_custom_call.1} parent=1 // pred_region
      %21 = vsyncadd [#allocation9], 0
      %s22 = sshll.u32 %s0, 4
      %s23 = int_to_ptr.hbm [resolvable:$true] %s22
      %s24 = sshll.u32 [#allocation8], 4
      %s25 = int_to_ptr.vmem [resolvable:$true] %s24
      %30 = dma.hbm_to_vmem [thread:$0]  %s23, 1024, %s25, [#allocation9], 128, 128, 8
    $region5: #{tpu_custom_call.1} parent=1 // pred_fallthru
      _
    // Predicated region
    $region6: #{tpu_custom_call.1} parent=1 // pred_check
      _
    $region7: #{tpu_custom_call.1} parent=1 // pred_check_branch
      %32 = sbr.rel (0) target = $region9
    $region8: #{tpu_custom_call.1} parent=1 // pred_region
      %34 = vsyncadd [#allocation12], 0
      %s36 = sshll.u32 %s1, 4
      %s37 = int_to_ptr.hbm [resolvable:$true] %s36
      %s38 = sshll.u32 [#allocation11], 4
      %s39 = int_to_ptr.vmem [resolvable:$true] %s38
      %41 = dma.hbm_to_vmem [thread:$0]  %s37, 128, %s39, [#allocation12]
    $region9: #{tpu_custom_call.1} parent=1 // pred_fallthru
      _
    // Predicated region
    $region10: #{tpu_custom_call.1} parent=1 // pred_check
      _
    $region11: #{tpu_custom_call.1} parent=1 // pred_check_branch
      %43 = sbr.rel (0) target = $region13
    $region12: #{tpu_custom_call.1} parent=1 // pred_region
      _
    $region13: #{tpu_custom_call.1} parent=1 // pred_fallthru
      _
    // Predicated region
    $region14: #{tpu_custom_call.1} parent=1 // pred_check
      _
    $region15: #{tpu_custom_call.1} parent=1 // pred_check_branch
      %45 = sbr.rel (0) target = $region17
    $region16: #{tpu_custom_call.1} parent=1 // pred_region
      _
    $region17: #{tpu_custom_call.1} parent=1 // pred_fallthru
      _
    // Predicated region
    $region18: #{tpu_custom_call.1} parent=1 // pred_check
      _
    $region19: #{tpu_custom_call.1} parent=1 // pred_check_branch
      %47 = sbr.rel (0) target = $region21
    $region20: #{tpu_custom_call.1} parent=1 // pred_region
      %49 = dma.done [#allocation9], 1024
    $region21: #{tpu_custom_call.1} parent=1 // pred_fallthru
      _
    // Predicated region
    $region22: #{tpu_custom_call.1} parent=1 // pred_check
      _
    $region23: #{tpu_custom_call.1} parent=1 // pred_check_branch
      %51 = sbr.rel (0) target = $region25
    $region24: #{tpu_custom_call.1} parent=1 // pred_region
      %53 = dma.done [#allocation12], 128
    $region25: #{tpu_custom_call.1} parent=1 // pred_fallthru
      _
    %p54 = scmp.eq.s32.totalorder 0, 0
    // Predicated region
    $region26: #{tpu_custom_call.1} parent=1 // pred_check
      %p55 = pneg %p54
    $region27: #{tpu_custom_call.1} parent=1 // pred_check_branch
      %57 = sbr.rel (%p55) target = $region29
    $region28: #{tpu_custom_call.1} parent=1 // pred_region
      // Predicated region
      $region30: #{tpu_custom_call.1} parent=28 // pred_check
        _
      $region31: #{tpu_custom_call.1} parent=28 // pred_check_branch
        %59 = sbr.rel target = $region33
      $region32: #{tpu_custom_call.1} parent=28 // pred_region
        %60 = sst [smem:[#allocation18]] [#allocation17]
        %61 = sst [smem:[#allocation19]] [#allocation16]
      $region33: #{tpu_custom_call.1} parent=28 // pred_fallthru
        _
      %63 = shalt.err (0)
      %s65 = sshll.u32 %s4, 4
      %s66 = int_to_ptr.hbm [resolvable:$true] %s65
      %s67 = sshll.u32 [#allocation2], 4
      %s68 = int_to_ptr.vmem [resolvable:$true] %s67
      %70 = dma.hbm_to_vmem [thread:$0]  %s66, 1024, %s68, [#allocation7]
      %s71 = scalar_lea.sflag [#allocation7], 1
      // Predicated region
      $region34: #{tpu_custom_call.1} parent=28 // pred_check
        _
      $region35: #{tpu_custom_call.1} parent=28 // pred_check_branch
        %73 = sbr.rel target = $region37
      $region36: #{tpu_custom_call.1} parent=28 // pred_region
        %74 = sst [smem:[#allocation18]] [#allocation21]
        %75 = sst [smem:[#allocation19]] [#allocation20]
      $region37: #{tpu_custom_call.1} parent=28 // pred_fallthru
        _
      %77 = shalt.err (0)
      %s79 = sshll.u32 %s5, 4
      %s80 = int_to_ptr.hbm [resolvable:$true] %s79
      %s81 = sshll.u32 [#allocation3], 4
      %s82 = int_to_ptr.vmem [resolvable:$true] %s81
      %84 = dma.hbm_to_vmem [thread:$0]  %s80, 1024, %s82, %s71
      %s85 = scalar_lea.sflag [#allocation7], 2
      // Predicated region
      $region38: #{tpu_custom_call.1} parent=28 // pred_check
        _
      $region39: #{tpu_custom_call.1} parent=28 // pred_check_branch
        %87 = sbr.rel target = $region41
      $region40: #{tpu_custom_call.1} parent=28 // pred_region
        %88 = sst [smem:[#allocation18]] [#allocation23]
        %89 = sst [smem:[#allocation19]] [#allocation22]
      $region41: #{tpu_custom_call.1} parent=28 // pred_fallthru
        _
      %91 = shalt.err (0)
      %s93 = sshll.u32 %s6, 4
      %s94 = int_to_ptr.hbm [resolvable:$true] %s93
      %s95 = sshll.u32 [#allocation4], 4
      %s96 = int_to_ptr.vmem [resolvable:$true] %s95
      %98 = dma.hbm_to_vmem [thread:$0]  %s94, 1024, %s96, %s85
      %s99 = smul.u32 4, 16
      %s100 = smul.u32 %s99, 1
      %s101 = sshll.u32 %s100, 4
      %102 = dma.done [#allocation7], %s101
      %s103 = sshll.u32 %s100, 4
      %104 = dma.done %s71, %s103
      %s105 = sshll.u32 %s100, 4
      %106 = dma.done %s85, %s105
      %v107 = vld [vmem:[#allocation11] sm:$0xff]
      %108 = vst [vmem:[#allocation6] sm:$0xff] %v107
    $region29: #{tpu_custom_call.1} parent=1 // pred_fallthru
      _
    %v109 = vld [vmem:[#allocation8] sm:$0xff]
    %v110 = vld [vmem:[#allocation8 + $0x8] sm:$0xff]
    %v111 = vld [vmem:[#allocation8 + $0x10] sm:$0xff]
    %v112 = vld [vmem:[#allocation8 + $0x18] sm:$0xff]
    %v113 = vld [vmem:[#allocation8 + $0x20] sm:$0xff]
    %v114 = vld [vmem:[#allocation8 + $0x28] sm:$0xff]
    %v115 = vld [vmem:[#allocation8 + $0x30] sm:$0xff]
    %v116 = vld [vmem:[#allocation8 + $0x38] sm:$0xff]
    %v117 = vpack.c.bf16 %v110, %v109
    %v118 = vpack.c.bf16 %v112, %v111
    %v119 = vpack.c.bf16 %v114, %v113
    %v120 = vpack.c.bf16 %v116, %v115
    %v121 = vld [vmem:[#allocation2] sm:$0xf]
    %v122 = vld [vmem:[#allocation2 + $0x4] sm:$0xf]
    %v123 = vld [vmem:[#allocation2 + $0x8] sm:$0xf]
    %v124 = vld [vmem:[#allocation2 + $0xc] sm:$0xf]
    %v125 = vld [vmem:[#allocation2 + $0x10] sm:$0xf]
    %v126 = vld [vmem:[#allocation2 + $0x14] sm:$0xf]
    %v127 = vld [vmem:[#allocation2 + $0x18] sm:$0xf]
    %v128 = vld [vmem:[#allocation2 + $0x1c] sm:$0xf]
    %v129 = vld [vmem:[#allocation2 + $0x20] sm:$0xf]
    %v130 = vld [vmem:[#allocation2 + $0x24] sm:$0xf]
    %v131 = vld [vmem:[#allocation2 + $0x28] sm:$0xf]
    %v132 = vld [vmem:[#allocation2 + $0x2c] sm:$0xf]
    %v133 = vld [vmem:[#allocation2 + $0x30] sm:$0xf]
    %v134 = vld [vmem:[#allocation2 + $0x34] sm:$0xf]
    %v135 = vld [vmem:[#allocation2 + $0x38] sm:$0xf]
    %v136 = vld [vmem:[#allocation2 + $0x3c] sm:$0xf]
    %v137 = vld [vmem:[%s2] sm:$0x1]
    %v139 = vperm.slane %v137, 0
    %v157 = vunpack.c.l.b16 %v121
    %v158 = vunpack.c.l.b16 %v122
    %v159 = vunpack.c.l.b16 %v123
    %v160 = vunpack.c.l.b16 %v124
    %v161 = vunpack.c.l.b16 %v125
    %v162 = vunpack.c.l.b16 %v126
    %v163 = vunpack.c.l.b16 %v127
    %v164 = vunpack.c.l.b16 %v128
    %v165 = vunpack.c.l.b16 %v129
    %v166 = vunpack.c.l.b16 %v130
    %v167 = vunpack.c.l.b16 %v131
    %v168 = vunpack.c.l.b16 %v132
    %v169 = vunpack.c.l.b16 %v133
    %v170 = vunpack.c.l.b16 %v134
    %v171 = vunpack.c.l.b16 %v135
    %v172 = vunpack.c.l.b16 %v136
    %v173 = vpack.c.b16 %v158, %v157
    %v174 = vpack.c.b16 %v160, %v159
    %v175 = vpack.c.b16 %v162, %v161
    %v176 = vpack.c.b16 %v164, %v163
    %v177 = vpack.c.b16 %v166, %v165
    %v178 = vpack.c.b16 %v168, %v167
    %v179 = vpack.c.b16 %v170, %v169
    %v180 = vpack.c.b16 %v172, %v171
    %189 = vmatpush.bf16.msra.mxu0 %v180
    %190 = vmatpush.bf16.msra.mxu0 %v179
    %191 = vmatpush.bf16.msra.mxu0 %v178
    %192 = vmatpush.bf16.msra.mxu0 %v177
    %193 = vmatpush.bf16.msra.mxu0 %v176
    %194 = vmatpush.bf16.msra.mxu0 %v175
    %195 = vmatpush.bf16.msra.mxu0 %v174
    %196 = vmatpush.bf16.msra.mxu0 %v173
    %197 = vmatmul.bf16.gmra.mxu0 %v117
    %v198 = vpop.f32.mrf.mxu0
    %v199 = vadd.f32 %v139, %v198
    %v200 = vpop.f32.mrf.mxu0
    %v201 = vadd.f32 %v139, %v200
    %202 = vmatmul.bf16.gmra.mxu0 %v118
    %v203 = vpop.f32.mrf.mxu0
    %v204 = vadd.f32 %v139, %v203
    %v205 = vpop.f32.mrf.mxu0
    %v206 = vadd.f32 %v139, %v205
    %207 = vmatmul.bf16.gmra.mxu0 %v119
    %v208 = vpop.f32.mrf.mxu0
    %v209 = vadd.f32 %v139, %v208
    %v210 = vpop.f32.mrf.mxu0
    %v211 = vadd.f32 %v139, %v210
    %212 = vmatmul.bf16.gmra.mxu0 %v120
    %v213 = vpop.f32.mrf.mxu0
    %v214 = vadd.f32 %v139, %v213
    %v215 = vpop.f32.mrf.mxu0
    %v216 = vadd.f32 %v139, %v215
    %217 = vdwg.mxu0
    %218 = vst [vmem:[#allocation5] sm:$0xff] %v199
    %219 = vst [vmem:[#allocation5 + $0x8] sm:$0xff] %v201
    %220 = vst [vmem:[#allocation5 + $0x10] sm:$0xff] %v204
    %221 = vst [vmem:[#allocation5 + $0x18] sm:$0xff] %v206
    %222 = vst [vmem:[#allocation5 + $0x20] sm:$0xff] %v209
    %223 = vst [vmem:[#allocation5 + $0x28] sm:$0xff] %v211
    %224 = vst [vmem:[#allocation5 + $0x30] sm:$0xff] %v214
    %225 = vst [vmem:[#allocation5 + $0x38] sm:$0xff] %v216
    %v226 = vld [vmem:[#allocation5] sm:$0xff]
    %v227 = vld [vmem:[#allocation6] sm:$0xff]
    %v228 = vpack.c.bf16 %v227, %v227
    %v229 = vld [vmem:[#allocation3] sm:$0xf]
    %v230 = vld [vmem:[#allocation3 + $0x4] sm:$0xf]
    %v231 = vld [vmem:[#allocation3 + $0x8] sm:$0xf]
    %v232 = vld [vmem:[#allocation3 + $0xc] sm:$0xf]
    %v233 = vld [vmem:[#allocation3 + $0x10] sm:$0xf]
    %v234 = vld [vmem:[#allocation3 + $0x14] sm:$0xf]
    %v235 = vld [vmem:[#allocation3 + $0x18] sm:$0xf]
    %v236 = vld [vmem:[#allocation3 + $0x1c] sm:$0xf]
    %v237 = vld [vmem:[#allocation3 + $0x20] sm:$0xf]
    %v238 = vld [vmem:[#allocation3 + $0x24] sm:$0xf]
    %v239 = vld [vmem:[#allocation3 + $0x28] sm:$0xf]
    %v240 = vld [vmem:[#allocation3 + $0x2c] sm:$0xf]
    %v241 = vld [vmem:[#allocation3 + $0x30] sm:$0xf]
    %v242 = vld [vmem:[#allocation3 + $0x34] sm:$0xf]
    %v243 = vld [vmem:[#allocation3 + $0x38] sm:$0xf]
    %v244 = vld [vmem:[#allocation3 + $0x3c] sm:$0xf]
    %v261 = vunpack.c.l.b16 %v229
    %v262 = vunpack.c.l.b16 %v230
    %v263 = vunpack.c.l.b16 %v231
    %v264 = vunpack.c.l.b16 %v232
    %v265 = vunpack.c.l.b16 %v233
    %v266 = vunpack.c.l.b16 %v234
    %v267 = vunpack.c.l.b16 %v235
    %v268 = vunpack.c.l.b16 %v236
    %v269 = vunpack.c.l.b16 %v237
    %v270 = vunpack.c.l.b16 %v238
    %v271 = vunpack.c.l.b16 %v239
    %v272 = vunpack.c.l.b16 %v240
    %v273 = vunpack.c.l.b16 %v241
    %v274 = vunpack.c.l.b16 %v242
    %v275 = vunpack.c.l.b16 %v243
    %v276 = vunpack.c.l.b16 %v244
    %v277 = vpack.c.b16 %v262, %v261
    %v278 = vpack.c.b16 %v264, %v263
    %v279 = vpack.c.b16 %v266, %v265
    %v280 = vpack.c.b16 %v268, %v267
    %v281 = vpack.c.b16 %v270, %v269
    %v282 = vpack.c.b16 %v272, %v271
    %v283 = vpack.c.b16 %v274, %v273
    %v284 = vpack.c.b16 %v276, %v275
    %293 = vmatpush.bf16.msra.mxu0 %v284
    %294 = vmatpush.bf16.msra.mxu0 %v283
    %295 = vmatpush.bf16.msra.mxu0 %v282
    %296 = vmatpush.bf16.msra.mxu0 %v281
    %297 = vmatpush.bf16.msra.mxu0 %v280
    %298 = vmatpush.bf16.msra.mxu0 %v279
    %299 = vmatpush.bf16.msra.mxu0 %v278
    %300 = vmatpush.bf16.msra.mxu0 %v277
    %301 = vmatmul.bf16.gmra.mxu0 %v228
    %v302 = vpop.f32.mrf.mxu0
    %v303 = vadd.f32 0.0, %v302
    %v304 = vpop.f32.mrf.mxu0
    %305 = vdwg.mxu0
    %v306 = vadd.f32 %v226, %v303
    %v307 = vtanh.pop %v306
    %308 = vst [vmem:[#allocation6] sm:$0xff] %v307
    %309 = vst [vmem:[#allocation13] sm:$0xff] %v307
    %s310 = scalar_lea.vmem [#allocation5], 8
    %v311 = vld [vmem:[%s310] sm:$0xff]
    %v312 = vld [vmem:[#allocation6] sm:$0xff]
    %v313 = vpack.c.bf16 %v312, %v312
    %v314 = vld [vmem:[#allocation3] sm:$0xf]
    %v315 = vld [vmem:[#allocation3 + $0x4] sm:$0xf]
    %v316 = vld [vmem:[#allocation3 + $0x8] sm:$0xf]
    %v317 = vld [vmem:[#allocation3 + $0xc] sm:$0xf]
    %v318 = vld [vmem:[#allocation3 + $0x10] sm:$0xf]
    %v319 = vld [vmem:[#allocation3 + $0x14] sm:$0xf]
    %v320 = vld [vmem:[#allocation3 + $0x18] sm:$0xf]
    %v321 = vld [vmem:[#allocation3 + $0x1c] sm:$0xf]
    %v322 = vld [vmem:[#allocation3 + $0x20] sm:$0xf]
    %v323 = vld [vmem:[#allocation3 + $0x24] sm:$0xf]
    %v324 = vld [vmem:[#allocation3 + $0x28] sm:$0xf]
    %v325 = vld [vmem:[#allocation3 + $0x2c] sm:$0xf]
    %v326 = vld [vmem:[#allocation3 + $0x30] sm:$0xf]
    %v327 = vld [vmem:[#allocation3 + $0x34] sm:$0xf]
    %v328 = vld [vmem:[#allocation3 + $0x38] sm:$0xf]
    %v329 = vld [vmem:[#allocation3 + $0x3c] sm:$0xf]
    %v346 = vunpack.c.l.b16 %v314
    %v347 = vunpack.c.l.b16 %v315
    %v348 = vunpack.c.l.b16 %v316
    %v349 = vunpack.c.l.b16 %v317
    %v350 = vunpack.c.l.b16 %v318
    %v351 = vunpack.c.l.b16 %v319
    %v352 = vunpack.c.l.b16 %v320
    %v353 = vunpack.c.l.b16 %v321
    %v354 = vunpack.c.l.b16 %v322
    %v355 = vunpack.c.l.b16 %v323
    %v356 = vunpack.c.l.b16 %v324
    %v357 = vunpack.c.l.b16 %v325
    %v358 = vunpack.c.l.b16 %v326
    %v359 = vunpack.c.l.b16 %v327
    %v360 = vunpack.c.l.b16 %v328
    %v361 = vunpack.c.l.b16 %v329
    %v362 = vpack.c.b16 %v347, %v346
    %v363 = vpack.c.b16 %v349, %v348
    %v364 = vpack.c.b16 %v351, %v350
    %v365 = vpack.c.b16 %v353, %v352
    %v366 = vpack.c.b16 %v355, %v354
    %v367 = vpack.c.b16 %v357, %v356
    %v368 = vpack.c.b16 %v359, %v358
    %v369 = vpack.c.b16 %v361, %v360
    %378 = vmatpush.bf16.msra.mxu0 %v369
    %379 = vmatpush.bf16.msra.mxu0 %v368
    %380 = vmatpush.bf16.msra.mxu0 %v367
    %381 = vmatpush.bf16.msra.mxu0 %v366
    %382 = vmatpush.bf16.msra.mxu0 %v365
    %383 = vmatpush.bf16.msra.mxu0 %v364
    %384 = vmatpush.bf16.msra.mxu0 %v363
    %385 = vmatpush.bf16.msra.mxu0 %v362
    %386 = vmatmul.bf16.gmra.mxu0 %v313
    %v387 = vpop.f32.mrf.mxu0
    %v388 = vadd.f32 0.0, %v387
    %v389 = vpop.f32.mrf.mxu0
    %390 = vdwg.mxu0
    %v391 = vadd.f32 %v311, %v388
    %v392 = vtanh.pop %v391
    %393 = vst [vmem:[#allocation6] sm:$0xff] %v392
    %s394 = scalar_lea.vmem [#allocation13], 8
    %395 = vst [vmem:[%s394] sm:$0xff] %v392
    %s396 = scalar_lea.vmem [#allocation5], 16
    %v397 = vld [vmem:[%s396] sm:$0xff]
    %v398 = vld [vmem:[#allocation6] sm:$0xff]
    %v399 = vpack.c.bf16 %v398, %v398
    %v400 = vld [vmem:[#allocation3] sm:$0xf]
    %v401 = vld [vmem:[#allocation3 + $0x4] sm:$0xf]
    %v402 = vld [vmem:[#allocation3 + $0x8] sm:$0xf]
    %v403 = vld [vmem:[#allocation3 + $0xc] sm:$0xf]
    %v404 = vld [vmem:[#allocation3 + $0x10] sm:$0xf]
    %v405 = vld [vmem:[#allocation3 + $0x14] sm:$0xf]
    %v406 = vld [vmem:[#allocation3 + $0x18] sm:$0xf]
    %v407 = vld [vmem:[#allocation3 + $0x1c] sm:$0xf]
    %v408 = vld [vmem:[#allocation3 + $0x20] sm:$0xf]
    %v409 = vld [vmem:[#allocation3 + $0x24] sm:$0xf]
    %v410 = vld [vmem:[#allocation3 + $0x28] sm:$0xf]
    %v411 = vld [vmem:[#allocation3 + $0x2c] sm:$0xf]
    %v412 = vld [vmem:[#allocation3 + $0x30] sm:$0xf]
    %v413 = vld [vmem:[#allocation3 + $0x34] sm:$0xf]
    %v414 = vld [vmem:[#allocation3 + $0x38] sm:$0xf]
    %v415 = vld [vmem:[#allocation3 + $0x3c] sm:$0xf]
    %v432 = vunpack.c.l.b16 %v400
    %v433 = vunpack.c.l.b16 %v401
    %v434 = vunpack.c.l.b16 %v402
    %v435 = vunpack.c.l.b16 %v403
    %v436 = vunpack.c.l.b16 %v404
    %v437 = vunpack.c.l.b16 %v405
    %v438 = vunpack.c.l.b16 %v406
    %v439 = vunpack.c.l.b16 %v407
    %v440 = vunpack.c.l.b16 %v408
    %v441 = vunpack.c.l.b16 %v409
    %v442 = vunpack.c.l.b16 %v410
    %v443 = vunpack.c.l.b16 %v411
    %v444 = vunpack.c.l.b16 %v412
    %v445 = vunpack.c.l.b16 %v413
    %v446 = vunpack.c.l.b16 %v414
    %v447 = vunpack.c.l.b16 %v415
    %v448 = vpack.c.b16 %v433, %v432
    %v449 = vpack.c.b16 %v435, %v434
    %v450 = vpack.c.b16 %v437, %v436
    %v451 = vpack.c.b16 %v439, %v438
    %v452 = vpack.c.b16 %v441, %v440
    %v453 = vpack.c.b16 %v443, %v442
    %v454 = vpack.c.b16 %v445, %v444
    %v455 = vpack.c.b16 %v447, %v446
    %464 = vmatpush.bf16.msra.mxu0 %v455
    %465 = vmatpush.bf16.msra.mxu0 %v454
    %466 = vmatpush.bf16.msra.mxu0 %v453
    %467 = vmatpush.bf16.msra.mxu0 %v452
    %468 = vmatpush.bf16.msra.mxu0 %v451
    %469 = vmatpush.bf16.msra.mxu0 %v450
    %470 = vmatpush.bf16.msra.mxu0 %v449
    %471 = vmatpush.bf16.msra.mxu0 %v448
    %472 = vmatmul.bf16.gmra.mxu0 %v399
    %v473 = vpop.f32.mrf.mxu0
    %v474 = vadd.f32 0.0, %v473
    %v475 = vpop.f32.mrf.mxu0
    %476 = vdwg.mxu0
    %v477 = vadd.f32 %v397, %v474
    %v478 = vtanh.pop %v477
    %479 = vst [vmem:[#allocation6] sm:$0xff] %v478
    %s480 = scalar_lea.vmem [#allocation13], 16
    %481 = vst [vmem:[%s480] sm:$0xff] %v478
    %s482 = scalar_lea.vmem [#allocation5], 24
    %v483 = vld [vmem:[%s482] sm:$0xff]
    %v484 = vld [vmem:[#allocation6] sm:$0xff]
    %v485 = vpack.c.bf16 %v484, %v484
    %v486 = vld [vmem:[#allocation3] sm:$0xf]
    %v487 = vld [vmem:[#allocation3 + $0x4] sm:$0xf]
    %v488 = vld [vmem:[#allocation3 + $0x8] sm:$0xf]
    %v489 = vld [vmem:[#allocation3 + $0xc] sm:$0xf]
    %v490 = vld [vmem:[#allocation3 + $0x10] sm:$0xf]
    %v491 = vld [vmem:[#allocation3 + $0x14] sm:$0xf]
    %v492 = vld [vmem:[#allocation3 + $0x18] sm:$0xf]
    %v493 = vld [vmem:[#allocation3 + $0x1c] sm:$0xf]
    %v494 = vld [vmem:[#allocation3 + $0x20] sm:$0xf]
    %v495 = vld [vmem:[#allocation3 + $0x24] sm:$0xf]
    %v496 = vld [vmem:[#allocation3 + $0x28] sm:$0xf]
    %v497 = vld [vmem:[#allocation3 + $0x2c] sm:$0xf]
    %v498 = vld [vmem:[#allocation3 + $0x30] sm:$0xf]
    %v499 = vld [vmem:[#allocation3 + $0x34] sm:$0xf]
    %v500 = vld [vmem:[#allocation3 + $0x38] sm:$0xf]
    %v501 = vld [vmem:[#allocation3 + $0x3c] sm:$0xf]
    %v518 = vunpack.c.l.b16 %v486
    %v519 = vunpack.c.l.b16 %v487
    %v520 = vunpack.c.l.b16 %v488
    %v521 = vunpack.c.l.b16 %v489
    %v522 = vunpack.c.l.b16 %v490
    %v523 = vunpack.c.l.b16 %v491
    %v524 = vunpack.c.l.b16 %v492
    %v525 = vunpack.c.l.b16 %v493
    %v526 = vunpack.c.l.b16 %v494
    %v527 = vunpack.c.l.b16 %v495
    %v528 = vunpack.c.l.b16 %v496
    %v529 = vunpack.c.l.b16 %v497
    %v530 = vunpack.c.l.b16 %v498
    %v531 = vunpack.c.l.b16 %v499
    %v532 = vunpack.c.l.b16 %v500
    %v533 = vunpack.c.l.b16 %v501
    %v534 = vpack.c.b16 %v519, %v518
    %v535 = vpack.c.b16 %v521, %v520
    %v536 = vpack.c.b16 %v523, %v522
    %v537 = vpack.c.b16 %v525, %v524
    %v538 = vpack.c.b16 %v527, %v526
    %v539 = vpack.c.b16 %v529, %v528
    %v540 = vpack.c.b16 %v531, %v530
    %v541 = vpack.c.b16 %v533, %v532
    %550 = vmatpush.bf16.msra.mxu0 %v541
    %551 = vmatpush.bf16.msra.mxu0 %v540
    %552 = vmatpush.bf16.msra.mxu0 %v539
    %553 = vmatpush.bf16.msra.mxu0 %v538
    %554 = vmatpush.bf16.msra.mxu0 %v537
    %555 = vmatpush.bf16.msra.mxu0 %v536
    %556 = vmatpush.bf16.msra.mxu0 %v535
    %557 = vmatpush.bf16.msra.mxu0 %v534
    %558 = vmatmul.bf16.gmra.mxu0 %v485
    %v559 = vpop.f32.mrf.mxu0
    %v560 = vadd.f32 0.0, %v559
    %v561 = vpop.f32.mrf.mxu0
    %562 = vdwg.mxu0
    %v563 = vadd.f32 %v483, %v560
    %v564 = vtanh.pop %v563
    %565 = vst [vmem:[#allocation6] sm:$0xff] %v564
    %s566 = scalar_lea.vmem [#allocation13], 24
    %567 = vst [vmem:[%s566] sm:$0xff] %v564
    %s568 = scalar_lea.vmem [#allocation5], 32
    %v569 = vld [vmem:[%s568] sm:$0xff]
    %v570 = vld [vmem:[#allocation6] sm:$0xff]
    %v571 = vpack.c.bf16 %v570, %v570
    %v572 = vld [vmem:[#allocation3] sm:$0xf]
    %v573 = vld [vmem:[#allocation3 + $0x4] sm:$0xf]
    %v574 = vld [vmem:[#allocation3 + $0x8] sm:$0xf]
    %v575 = vld [vmem:[#allocation3 + $0xc] sm:$0xf]
    %v576 = vld [vmem:[#allocation3 + $0x10] sm:$0xf]
    %v577 = vld [vmem:[#allocation3 + $0x14] sm:$0xf]
    %v578 = vld [vmem:[#allocation3 + $0x18] sm:$0xf]
    %v579 = vld [vmem:[#allocation3 + $0x1c] sm:$0xf]
    %v580 = vld [vmem:[#allocation3 + $0x20] sm:$0xf]
    %v581 = vld [vmem:[#allocation3 + $0x24] sm:$0xf]
    %v582 = vld [vmem:[#allocation3 + $0x28] sm:$0xf]
    %v583 = vld [vmem:[#allocation3 + $0x2c] sm:$0xf]
    %v584 = vld [vmem:[#allocation3 + $0x30] sm:$0xf]
    %v585 = vld [vmem:[#allocation3 + $0x34] sm:$0xf]
    %v586 = vld [vmem:[#allocation3 + $0x38] sm:$0xf]
    %v587 = vld [vmem:[#allocation3 + $0x3c] sm:$0xf]
    %v604 = vunpack.c.l.b16 %v572
    %v605 = vunpack.c.l.b16 %v573
    %v606 = vunpack.c.l.b16 %v574
    %v607 = vunpack.c.l.b16 %v575
    %v608 = vunpack.c.l.b16 %v576
    %v609 = vunpack.c.l.b16 %v577
    %v610 = vunpack.c.l.b16 %v578
    %v611 = vunpack.c.l.b16 %v579
    %v612 = vunpack.c.l.b16 %v580
    %v613 = vunpack.c.l.b16 %v581
    %v614 = vunpack.c.l.b16 %v582
    %v615 = vunpack.c.l.b16 %v583
    %v616 = vunpack.c.l.b16 %v584
    %v617 = vunpack.c.l.b16 %v585
    %v618 = vunpack.c.l.b16 %v586
    %v619 = vunpack.c.l.b16 %v587
    %v620 = vpack.c.b16 %v605, %v604
    %v621 = vpack.c.b16 %v607, %v606
    %v622 = vpack.c.b16 %v609, %v608
    %v623 = vpack.c.b16 %v611, %v610
    %v624 = vpack.c.b16 %v613, %v612
    %v625 = vpack.c.b16 %v615, %v614
    %v626 = vpack.c.b16 %v617, %v616
    %v627 = vpack.c.b16 %v619, %v618
    %636 = vmatpush.bf16.msra.mxu0 %v627
    %637 = vmatpush.bf16.msra.mxu0 %v626
    %638 = vmatpush.bf16.msra.mxu0 %v625
    %639 = vmatpush.bf16.msra.mxu0 %v624
    %640 = vmatpush.bf16.msra.mxu0 %v623
    %641 = vmatpush.bf16.msra.mxu0 %v622
    %642 = vmatpush.bf16.msra.mxu0 %v621
    %643 = vmatpush.bf16.msra.mxu0 %v620
    %644 = vmatmul.bf16.gmra.mxu0 %v571
    %v645 = vpop.f32.mrf.mxu0
    %v646 = vadd.f32 0.0, %v645
    %v647 = vpop.f32.mrf.mxu0
    %648 = vdwg.mxu0
    %v649 = vadd.f32 %v569, %v646
    %v650 = vtanh.pop %v649
    %651 = vst [vmem:[#allocation6] sm:$0xff] %v650
    %s652 = scalar_lea.vmem [#allocation13], 32
    %653 = vst [vmem:[%s652] sm:$0xff] %v650
    %s654 = scalar_lea.vmem [#allocation5], 40
    %v655 = vld [vmem:[%s654] sm:$0xff]
    %v656 = vld [vmem:[#allocation6] sm:$0xff]
    %v657 = vpack.c.bf16 %v656, %v656
    %v658 = vld [vmem:[#allocation3] sm:$0xf]
    %v659 = vld [vmem:[#allocation3 + $0x4] sm:$0xf]
    %v660 = vld [vmem:[#allocation3 + $0x8] sm:$0xf]
    %v661 = vld [vmem:[#allocation3 + $0xc] sm:$0xf]
    %v662 = vld [vmem:[#allocation3 + $0x10] sm:$0xf]
    %v663 = vld [vmem:[#allocation3 + $0x14] sm:$0xf]
    %v664 = vld [vmem:[#allocation3 + $0x18] sm:$0xf]
    %v665 = vld [vmem:[#allocation3 + $0x1c] sm:$0xf]
    %v666 = vld [vmem:[#allocation3 + $0x20] sm:$0xf]
    %v667 = vld [vmem:[#allocation3 + $0x24] sm:$0xf]
    %v668 = vld [vmem:[#allocation3 + $0x28] sm:$0xf]
    %v669 = vld [vmem:[#allocation3 + $0x2c] sm:$0xf]
    %v670 = vld [vmem:[#allocation3 + $0x30] sm:$0xf]
    %v671 = vld [vmem:[#allocation3 + $0x34] sm:$0xf]
    %v672 = vld [vmem:[#allocation3 + $0x38] sm:$0xf]
    %v673 = vld [vmem:[#allocation3 + $0x3c] sm:$0xf]
    %v690 = vunpack.c.l.b16 %v658
    %v691 = vunpack.c.l.b16 %v659
    %v692 = vunpack.c.l.b16 %v660
    %v693 = vunpack.c.l.b16 %v661
    %v694 = vunpack.c.l.b16 %v662
    %v695 = vunpack.c.l.b16 %v663
    %v696 = vunpack.c.l.b16 %v664
    %v697 = vunpack.c.l.b16 %v665
    %v698 = vunpack.c.l.b16 %v666
    %v699 = vunpack.c.l.b16 %v667
    %v700 = vunpack.c.l.b16 %v668
    %v701 = vunpack.c.l.b16 %v669
    %v702 = vunpack.c.l.b16 %v670
    %v703 = vunpack.c.l.b16 %v671
    %v704 = vunpack.c.l.b16 %v672
    %v705 = vunpack.c.l.b16 %v673
    %v706 = vpack.c.b16 %v691, %v690
    %v707 = vpack.c.b16 %v693, %v692
    %v708 = vpack.c.b16 %v695, %v694
    %v709 = vpack.c.b16 %v697, %v696
    %v710 = vpack.c.b16 %v699, %v698
    %v711 = vpack.c.b16 %v701, %v700
    %v712 = vpack.c.b16 %v703, %v702
    %v713 = vpack.c.b16 %v705, %v704
    %722 = vmatpush.bf16.msra.mxu0 %v713
    %723 = vmatpush.bf16.msra.mxu0 %v712
    %724 = vmatpush.bf16.msra.mxu0 %v711
    %725 = vmatpush.bf16.msra.mxu0 %v710
    %726 = vmatpush.bf16.msra.mxu0 %v709
    %727 = vmatpush.bf16.msra.mxu0 %v708
    %728 = vmatpush.bf16.msra.mxu0 %v707
    %729 = vmatpush.bf16.msra.mxu0 %v706
    %730 = vmatmul.bf16.gmra.mxu0 %v657
    %v731 = vpop.f32.mrf.mxu0
    %v732 = vadd.f32 0.0, %v731
    %v733 = vpop.f32.mrf.mxu0
    %734 = vdwg.mxu0
    %v735 = vadd.f32 %v655, %v732
    %v736 = vtanh.pop %v735
    %737 = vst [vmem:[#allocation6] sm:$0xff] %v736
    %s738 = scalar_lea.vmem [#allocation13], 40
    %739 = vst [vmem:[%s738] sm:$0xff] %v736
    %s740 = scalar_lea.vmem [#allocation5], 48
    %v741 = vld [vmem:[%s740] sm:$0xff]
    %v742 = vld [vmem:[#allocation6] sm:$0xff]
    %v743 = vpack.c.bf16 %v742, %v742
    %v744 = vld [vmem:[#allocation3] sm:$0xf]
    %v745 = vld [vmem:[#allocation3 + $0x4] sm:$0xf]
    %v746 = vld [vmem:[#allocation3 + $0x8] sm:$0xf]
    %v747 = vld [vmem:[#allocation3 + $0xc] sm:$0xf]
    %v748 = vld [vmem:[#allocation3 + $0x10] sm:$0xf]
    %v749 = vld [vmem:[#allocation3 + $0x14] sm:$0xf]
    %v750 = vld [vmem:[#allocation3 + $0x18] sm:$0xf]
    %v751 = vld [vmem:[#allocation3 + $0x1c] sm:$0xf]
    %v752 = vld [vmem:[#allocation3 + $0x20] sm:$0xf]
    %v753 = vld [vmem:[#allocation3 + $0x24] sm:$0xf]
    %v754 = vld [vmem:[#allocation3 + $0x28] sm:$0xf]
    %v755 = vld [vmem:[#allocation3 + $0x2c] sm:$0xf]
    %v756 = vld [vmem:[#allocation3 + $0x30] sm:$0xf]
    %v757 = vld [vmem:[#allocation3 + $0x34] sm:$0xf]
    %v758 = vld [vmem:[#allocation3 + $0x38] sm:$0xf]
    %v759 = vld [vmem:[#allocation3 + $0x3c] sm:$0xf]
    %v776 = vunpack.c.l.b16 %v744
    %v777 = vunpack.c.l.b16 %v745
    %v778 = vunpack.c.l.b16 %v746
    %v779 = vunpack.c.l.b16 %v747
    %v780 = vunpack.c.l.b16 %v748
    %v781 = vunpack.c.l.b16 %v749
    %v782 = vunpack.c.l.b16 %v750
    %v783 = vunpack.c.l.b16 %v751
    %v784 = vunpack.c.l.b16 %v752
    %v785 = vunpack.c.l.b16 %v753
    %v786 = vunpack.c.l.b16 %v754
    %v787 = vunpack.c.l.b16 %v755
    %v788 = vunpack.c.l.b16 %v756
    %v789 = vunpack.c.l.b16 %v757
    %v790 = vunpack.c.l.b16 %v758
    %v791 = vunpack.c.l.b16 %v759
    %v792 = vpack.c.b16 %v777, %v776
    %v793 = vpack.c.b16 %v779, %v778
    %v794 = vpack.c.b16 %v781, %v780
    %v795 = vpack.c.b16 %v783, %v782
    %v796 = vpack.c.b16 %v785, %v784
    %v797 = vpack.c.b16 %v787, %v786
    %v798 = vpack.c.b16 %v789, %v788
    %v799 = vpack.c.b16 %v791, %v790
    %808 = vmatpush.bf16.msra.mxu0 %v799
    %809 = vmatpush.bf16.msra.mxu0 %v798
    %810 = vmatpush.bf16.msra.mxu0 %v797
    %811 = vmatpush.bf16.msra.mxu0 %v796
    %812 = vmatpush.bf16.msra.mxu0 %v795
    %813 = vmatpush.bf16.msra.mxu0 %v794
    %814 = vmatpush.bf16.msra.mxu0 %v793
    %815 = vmatpush.bf16.msra.mxu0 %v792
    %816 = vmatmul.bf16.gmra.mxu0 %v743
    %v817 = vpop.f32.mrf.mxu0
    %v818 = vadd.f32 0.0, %v817
    %v819 = vpop.f32.mrf.mxu0
    %820 = vdwg.mxu0
    %v821 = vadd.f32 %v741, %v818
    %v822 = vtanh.pop %v821
    %823 = vst [vmem:[#allocation6] sm:$0xff] %v822
    %s824 = scalar_lea.vmem [#allocation13], 48
    %825 = vst [vmem:[%s824] sm:$0xff] %v822
    %s826 = scalar_lea.vmem [#allocation5], 56
    %v827 = vld [vmem:[%s826] sm:$0xff]
    %v828 = vld [vmem:[#allocation6] sm:$0xff]
    %v829 = vpack.c.bf16 %v828, %v828
    %v830 = vld [vmem:[#allocation3] sm:$0xf]
    %v831 = vld [vmem:[#allocation3 + $0x4] sm:$0xf]
    %v832 = vld [vmem:[#allocation3 + $0x8] sm:$0xf]
    %v833 = vld [vmem:[#allocation3 + $0xc] sm:$0xf]
    %v834 = vld [vmem:[#allocation3 + $0x10] sm:$0xf]
    %v835 = vld [vmem:[#allocation3 + $0x14] sm:$0xf]
    %v836 = vld [vmem:[#allocation3 + $0x18] sm:$0xf]
    %v837 = vld [vmem:[#allocation3 + $0x1c] sm:$0xf]
    %v838 = vld [vmem:[#allocation3 + $0x20] sm:$0xf]
    %v839 = vld [vmem:[#allocation3 + $0x24] sm:$0xf]
    %v840 = vld [vmem:[#allocation3 + $0x28] sm:$0xf]
    %v841 = vld [vmem:[#allocation3 + $0x2c] sm:$0xf]
    %v842 = vld [vmem:[#allocation3 + $0x30] sm:$0xf]
    %v843 = vld [vmem:[#allocation3 + $0x34] sm:$0xf]
    %v844 = vld [vmem:[#allocation3 + $0x38] sm:$0xf]
    %v845 = vld [vmem:[#allocation3 + $0x3c] sm:$0xf]
    %v862 = vunpack.c.l.b16 %v830
    %v863 = vunpack.c.l.b16 %v831
    %v864 = vunpack.c.l.b16 %v832
    %v865 = vunpack.c.l.b16 %v833
    %v866 = vunpack.c.l.b16 %v834
    %v867 = vunpack.c.l.b16 %v835
    %v868 = vunpack.c.l.b16 %v836
    %v869 = vunpack.c.l.b16 %v837
    %v870 = vunpack.c.l.b16 %v838
    %v871 = vunpack.c.l.b16 %v839
    %v872 = vunpack.c.l.b16 %v840
    %v873 = vunpack.c.l.b16 %v841
    %v874 = vunpack.c.l.b16 %v842
    %v875 = vunpack.c.l.b16 %v843
    %v876 = vunpack.c.l.b16 %v844
    %v877 = vunpack.c.l.b16 %v845
    %v878 = vpack.c.b16 %v863, %v862
    %v879 = vpack.c.b16 %v865, %v864
    %v880 = vpack.c.b16 %v867, %v866
    %v881 = vpack.c.b16 %v869, %v868
    %v882 = vpack.c.b16 %v871, %v870
    %v883 = vpack.c.b16 %v873, %v872
    %v884 = vpack.c.b16 %v875, %v874
    %v885 = vpack.c.b16 %v877, %v876
    %894 = vmatpush.bf16.msra.mxu0 %v885
    %895 = vmatpush.bf16.msra.mxu0 %v884
    %896 = vmatpush.bf16.msra.mxu0 %v883
    %897 = vmatpush.bf16.msra.mxu0 %v882
    %898 = vmatpush.bf16.msra.mxu0 %v881
    %899 = vmatpush.bf16.msra.mxu0 %v880
    %900 = vmatpush.bf16.msra.mxu0 %v879
    %901 = vmatpush.bf16.msra.mxu0 %v878
    %902 = vmatmul.bf16.gmra.mxu0 %v829
    %v903 = vpop.f32.mrf.mxu0
    %v904 = vadd.f32 0.0, %v903
    %v905 = vpop.f32.mrf.mxu0
    %906 = vdwg.mxu0
    %v907 = vadd.f32 %v827, %v904
    %v908 = vtanh.pop %v907
    %909 = vst [vmem:[#allocation6] sm:$0xff] %v908
    %s910 = scalar_lea.vmem [#allocation13], 56
    %911 = vst [vmem:[%s910] sm:$0xff] %v908
    %v912 = vld [vmem:[#allocation13] sm:$0xff]
    %v913 = vld [vmem:[#allocation13 + $0x8] sm:$0xff]
    %v914 = vld [vmem:[#allocation13 + $0x10] sm:$0xff]
    %v915 = vld [vmem:[#allocation13 + $0x18] sm:$0xff]
    %v916 = vld [vmem:[#allocation13 + $0x20] sm:$0xff]
    %v917 = vld [vmem:[#allocation13 + $0x28] sm:$0xff]
    %v918 = vld [vmem:[#allocation13 + $0x30] sm:$0xff]
    %v919 = vld [vmem:[#allocation13 + $0x38] sm:$0xff]
    %v920 = vpack.c.bf16 %v913, %v912
    %v921 = vpack.c.bf16 %v915, %v914
    %v922 = vpack.c.bf16 %v917, %v916
    %v923 = vpack.c.bf16 %v919, %v918
    %v924 = vld [vmem:[#allocation4] sm:$0xf]
    %v925 = vld [vmem:[#allocation4 + $0x4] sm:$0xf]
    %v926 = vld [vmem:[#allocation4 + $0x8] sm:$0xf]
    %v927 = vld [vmem:[#allocation4 + $0xc] sm:$0xf]
    %v928 = vld [vmem:[#allocation4 + $0x10] sm:$0xf]
    %v929 = vld [vmem:[#allocation4 + $0x14] sm:$0xf]
    %v930 = vld [vmem:[#allocation4 + $0x18] sm:$0xf]
    %v931 = vld [vmem:[#allocation4 + $0x1c] sm:$0xf]
    %v932 = vld [vmem:[#allocation4 + $0x20] sm:$0xf]
    %v933 = vld [vmem:[#allocation4 + $0x24] sm:$0xf]
    %v934 = vld [vmem:[#allocation4 + $0x28] sm:$0xf]
    %v935 = vld [vmem:[#allocation4 + $0x2c] sm:$0xf]
    %v936 = vld [vmem:[#allocation4 + $0x30] sm:$0xf]
    %v937 = vld [vmem:[#allocation4 + $0x34] sm:$0xf]
    %v938 = vld [vmem:[#allocation4 + $0x38] sm:$0xf]
    %v939 = vld [vmem:[#allocation4 + $0x3c] sm:$0xf]
    %v940 = vld [vmem:[%s3] sm:$0x1]
    %v942 = vperm.slane %v940, 0
    %v960 = vunpack.c.l.b16 %v924
    %v961 = vunpack.c.l.b16 %v925
    %v962 = vunpack.c.l.b16 %v926
    %v963 = vunpack.c.l.b16 %v927
    %v964 = vunpack.c.l.b16 %v928
    %v965 = vunpack.c.l.b16 %v929
    %v966 = vunpack.c.l.b16 %v930
    %v967 = vunpack.c.l.b16 %v931
    %v968 = vunpack.c.l.b16 %v932
    %v969 = vunpack.c.l.b16 %v933
    %v970 = vunpack.c.l.b16 %v934
    %v971 = vunpack.c.l.b16 %v935
    %v972 = vunpack.c.l.b16 %v936
    %v973 = vunpack.c.l.b16 %v937
    %v974 = vunpack.c.l.b16 %v938
    %v975 = vunpack.c.l.b16 %v939
    %v976 = vpack.c.b16 %v961, %v960
    %v977 = vpack.c.b16 %v963, %v962
    %v978 = vpack.c.b16 %v965, %v964
    %v979 = vpack.c.b16 %v967, %v966
    %v980 = vpack.c.b16 %v969, %v968
    %v981 = vpack.c.b16 %v971, %v970
    %v982 = vpack.c.b16 %v973, %v972
    %v983 = vpack.c.b16 %v975, %v974
    %992 = vmatpush.bf16.msra.mxu0 %v983
    %993 = vmatpush.bf16.msra.mxu0 %v982
    %994 = vmatpush.bf16.msra.mxu0 %v981
    %995 = vmatpush.bf16.msra.mxu0 %v980
    %996 = vmatpush.bf16.msra.mxu0 %v979
    %997 = vmatpush.bf16.msra.mxu0 %v978
    %998 = vmatpush.bf16.msra.mxu0 %v977
    %999 = vmatpush.bf16.msra.mxu0 %v976
    %1000 = vmatmul.bf16.gmra.mxu0 %v920
    %v1001 = vpop.f32.mrf.mxu0
    %v1002 = vadd.f32 %v942, %v1001
    %v1003 = vpop.f32.mrf.mxu0
    %v1004 = vadd.f32 %v942, %v1003
    %1005 = vmatmul.bf16.gmra.mxu0 %v921
    %v1006 = vpop.f32.mrf.mxu0
    %v1007 = vadd.f32 %v942, %v1006
    %v1008 = vpop.f32.mrf.mxu0
    %v1009 = vadd.f32 %v942, %v1008
    %1010 = vmatmul.bf16.gmra.mxu0 %v922
    %v1011 = vpop.f32.mrf.mxu0
    %v1012 = vadd.f32 %v942, %v1011
    %v1013 = vpop.f32.mrf.mxu0
    %v1014 = vadd.f32 %v942, %v1013
    %1015 = vmatmul.bf16.gmra.mxu0 %v923
    %v1016 = vpop.f32.mrf.mxu0
    %v1017 = vadd.f32 %v942, %v1016
    %v1018 = vpop.f32.mrf.mxu0
    %v1019 = vadd.f32 %v942, %v1018
    %1020 = vdwg.mxu0
    %1021 = vst [vmem:[#allocation14] sm:$0xff] %v1002
    %1022 = vst [vmem:[#allocation14 + $0x8] sm:$0xff] %v1004
    %1023 = vst [vmem:[#allocation14 + $0x10] sm:$0xff] %v1007
    %1024 = vst [vmem:[#allocation14 + $0x18] sm:$0xff] %v1009
    %1025 = vst [vmem:[#allocation14 + $0x20] sm:$0xff] %v1012
    %1026 = vst [vmem:[#allocation14 + $0x28] sm:$0xff] %v1014
    %1027 = vst [vmem:[#allocation14 + $0x30] sm:$0xff] %v1017
    %1028 = vst [vmem:[#allocation14 + $0x38] sm:$0xff] %v1019
    // Predicated region
    $region42: #{tpu_custom_call.1} parent=1 // pred_check
      _
    $region43: #{tpu_custom_call.1} parent=1 // pred_check_branch
      %1030 = sbr.rel (0) target = $region45
    $region44: #{tpu_custom_call.1} parent=1 // pred_region
      %1032 = vsyncadd [#allocation10], 0
      %s1033 = sshll.u32 [#allocation13], 4
      %s1034 = int_to_ptr.vmem [resolvable:$true] %s1033
      %s1035 = sshll.u32 %s7, 4
      %s1036 = int_to_ptr.hbm [resolvable:$true] %s1035
      %1041 = dma.vmem_to_hbm [thread:$0]  %s1034, 1024, %s1036, [#allocation10], 128, 128, 8
    $region45: #{tpu_custom_call.1} parent=1 // pred_fallthru
      _
    // Predicated region
    $region46: #{tpu_custom_call.1} parent=1 // pred_check
      _
    $region47: #{tpu_custom_call.1} parent=1 // pred_check_branch
      %1043 = sbr.rel (0) target = $region49
    $region48: #{tpu_custom_call.1} parent=1 // pred_region
      %1045 = vsyncadd [#allocation15], 0
      %s1046 = sshll.u32 [#allocation14], 4
      %s1047 = int_to_ptr.vmem [resolvable:$true] %s1046
      %s1048 = sshll.u32 %s8, 4
      %s1049 = int_to_ptr.hbm [resolvable:$true] %s1048
      %1054 = dma.vmem_to_hbm [thread:$0]  %s1047, 1024, %s1049, [#allocation15], 128, 128, 8
    $region49: #{tpu_custom_call.1} parent=1 // pred_fallthru
      _
    // Predicated region
    $region50: #{tpu_custom_call.1} parent=1 // pred_check
      _
    $region51: #{tpu_custom_call.1} parent=1 // pred_check_branch
      %1056 = sbr.rel (0) target = $region53
    $region52: #{tpu_custom_call.1} parent=1 // pred_region
      %1058 = dma.done [#allocation10], 1024
    $region53: #{tpu_custom_call.1} parent=1 // pred_fallthru
      _
    // Predicated region
    $region54: #{tpu_custom_call.1} parent=1 // pred_check
      _
    $region55: #{tpu_custom_call.1} parent=1 // pred_check_branch
      %1060 = sbr.rel (0) target = $region57
    $region56: #{tpu_custom_call.1} parent=1 // pred_region
      %1062 = dma.done [#allocation15], 1024
    $region57: #{tpu_custom_call.1} parent=1 // pred_fallthru
      _
    %1063 = vsyncpa [#allocation9], 1
    %1064 = vsyncpa [#allocation12], 1
    %1065 = vsyncpa [#allocation10], 1
    %1066 = vsyncpa [#allocation15], 1
  %1067 = vsyncmov [#allocation7]
  %s1068 = vpop.sfrf %1067
  %p1069 = scmp.eq.s32.totalorder %s1068, 0
  %p1070 = pneg %p1069
  %1072 = shalt.err (%p1070)
  %s1073 = scalar_lea.sflag [#allocation7], 1
  %1074 = vsyncmov %s1073
  %s1075 = vpop.sfrf %1074
  %p1076 = scmp.eq.s32.totalorder %s1075, 0
  %p1077 = pneg %p1076
  %1079 = shalt.err (%p1077)
  %s1080 = scalar_lea.sflag [#allocation7], 2
  %1081 = vsyncmov %s1080
  %s1082 = vpop.sfrf %1081
  %p1083 = scmp.eq.s32.totalorder %s1082, 0
  %p1084 = pneg %p1083
  %1086 = shalt.err (%p1084)

</llo_original>
